<compile_context>
chip_gen: v7x
topology: tpu7x:2x2x1
jax: 0.10.0
libtpu: 0.0.40
codegen_flags: <defaults>
</compile_context>

<pallas_src>
import math

import jax
import jax.numpy as jnp
from jax.experimental import pallas as pl
from jax.experimental.pallas import tpu as pltpu


# ----------------------------------------------------------------------------
# Pallas kernels
# ----------------------------------------------------------------------------

def _make_linear_kernel(apply_relu: bool, has_residual: bool, use_mxu: bool):
    """out = act( x @ w + b [+ residual] ) on a (tm, K) x (K, N) tile.

    MXU path: bf16 inputs, f32 accumulation.  VPU path (tiny K, e.g. fc0 with
    in_dim=1): broadcast multiply-add, avoids a mostly-idle systolic array.
    """
    def kernel(*refs):
        if has_residual:
            x_ref, w_ref, b_ref, r_ref, o_ref = refs
        else:
            x_ref, w_ref, b_ref, o_ref = refs
            r_ref = None
        if use_mxu:
            acc = jnp.dot(x_ref[...].astype(jnp.bfloat16),
                          w_ref[...].astype(jnp.bfloat16),
                          preferred_element_type=jnp.float32)
        else:
            x = x_ref[...].astype(jnp.float32)
            w = w_ref[...].astype(jnp.float32)
            acc = jnp.zeros(o_ref.shape, jnp.float32)
            for k in range(x_ref.shape[1]):          # static unroll, K is tiny
                acc = acc + x[:, k:k + 1] * w[k:k + 1, :]
        acc = acc + b_ref[...]                       # (1, N) broadcasts over rows
        if r_ref is not None:
            acc = acc + r_ref[...]
        if apply_relu:
            acc = jnp.maximum(acc, 0.0)
        o_ref[...] = acc.astype(o_ref.dtype)
    return kernel


def _row_tile(m: int) -> int:
    """Largest row tile <= 1024 dividing m, but capped at m/2 (when that stays a
    multiple of 8) so the parallel row axis has >=2 grid steps for v7x megacore."""
    if m % 2 == 0 and (m // 2) % 8 == 0:
        cap = m // 2
    else:
        cap = m
    for t in (1024, 512, 256, 128, 64, 32, 16, 8):
        if t <= cap and m % t == 0:
            return t
    return m  # full extent (always legal)


def pallas_linear(x, w, b, residual=None, relu=False):
    """x: (M, K) f32, w: (K, N) bf16/f32, b: (N,) f32, residual: (M, N) f32 or None."""
    M, K = x.shape
    K2, N = w.shape
    assert K == K2
    use_mxu = K >= 8
    tm = _row_tile(M)
    grid = (pl.cdiv(M, tm),)

    # NOTE: w/b index_maps are constant; pl.Buffered(1) on them would save a
    # little VMEM on v7x once tiles/widths are large, left at the default here.
    in_specs = [
        pl.BlockSpec((tm, K), lambda i: (i, 0)),
        pl.BlockSpec((K, N), lambda i: (0, 0)),
        pl.BlockSpec((1, N), lambda i: (0, 0)),
    ]
    args = [x, w, b.reshape(1, N)]
    if residual is not None:
        in_specs.append(pl.BlockSpec((tm, N), lambda i: (i, 0)))
        args.append(residual)

    kernel = _make_linear_kernel(relu, residual is not None, use_mxu)
    return pl.pallas_call(
        kernel,
        out_shape=jax.ShapeDtypeStruct((M, N), jnp.float32),
        grid=grid,
        in_specs=in_specs,
        out_specs=pl.BlockSpec((tm, N), lambda i: (i, 0)),
        compiler_params=pltpu.CompilerParams(dimension_semantics=("parallel",)),
    )(*args)


def _spectral_kernel(x_ref, w_ref, o_ref):
    """Fused complex channel-mix over all kept modes in one batched real matmul.

    x: (m, B, 2Cin) = [re | im], w: (m, 2Cin, 2Cout) = [[wr, wi], [-wi, wr]],
    out: (m, B, 2Cout) = [re | im].  One grid step, f32 accumulation.
    """
    y = jax.lax.dot_general(
        x_ref[...].astype(jnp.bfloat16), w_ref[...],
        dimension_numbers=(((2,), (1,)), ((0,), (0,))),
        preferred_element_type=jnp.float32)
    o_ref[...] = y.astype(o_ref.dtype)


def pallas_spectral_mul(xs, w_fused):
    """xs: (m, B, 2Cin) f32, w_fused: (m, 2Cin, 2Cout) bf16 -> (m, B, 2Cout) f32."""
    m, B, two_cin = xs.shape
    _, _, two_cout = w_fused.shape
    return pl.pallas_call(
        _spectral_kernel,
        out_shape=jax.ShapeDtypeStruct((m, B, two_cout), jnp.float32),
        grid=(1,),
        in_specs=[
            pl.BlockSpec((m, B, two_cin), lambda i: (0, 0, 0)),
            pl.BlockSpec((m, two_cin, two_cout), lambda i: (0, 0, 0)),
        ],
        out_specs=pl.BlockSpec((m, B, two_cout), lambda i: (0, 0, 0)),
    )(xs, w_fused)


# ----------------------------------------------------------------------------
# Parameters (deterministic, shapes match the PyTorch module)
# ----------------------------------------------------------------------------

def init_params(key, modes, width, layers, fc_dim, in_dim, out_dim):
    if layers is None:
        layers = [width] * 4
    keys = iter(jax.random.split(key, 64))

    def linear_init(k, fan_in, fan_out, w_dtype=jnp.bfloat16):
        k1, k2 = jax.random.split(k)
        bound = 1.0 / math.sqrt(fan_in)
        w = jax.random.uniform(k1, (fan_in, fan_out), jnp.float32, -bound, bound)
        b = jax.random.uniform(k2, (fan_out,), jnp.float32, -bound, bound)
        return w.astype(w_dtype), b

    params = {}
    # fc0 uses the VPU path (K = in_dim is tiny); keep its weight in f32.
    params["fc0"] = linear_init(next(keys), in_dim, layers[0], w_dtype=jnp.float32)

    sp_fused, sp_complex = [], []
    for cin, cout, m in zip(layers, layers[1:], modes):
        k1, k2 = jax.random.split(next(keys))
        scale = 1.0 / (cin * cout)
        wr = scale * jax.random.uniform(k1, (cin, cout, m), jnp.float32)
        wi = scale * jax.random.uniform(k2, (cin, cout, m), jnp.float32)
        # Quantize the parts to bf16 once so kernel and reference share weights.
        wr = wr.astype(jnp.bfloat16).astype(jnp.float32)
        wi = wi.astype(jnp.bfloat16).astype(jnp.float32)
        sp_complex.append(jax.lax.complex(wr, wi))          # (cin, cout, m)
        # Fused real form, pre-transposed to (m, 2cin, 2cout), stored bf16.
        wr_m = jnp.transpose(wr, (2, 0, 1))                 # (m, cin, cout)
        wi_m = jnp.transpose(wi, (2, 0, 1))
        top = jnp.concatenate([wr_m, wi_m], axis=-1)        # (m, cin, 2cout)
        bot = jnp.concatenate([-wi_m, wr_m], axis=-1)       # (m, cin, 2cout)
        sp_fused.append(jnp.concatenate([top, bot], axis=1).astype(jnp.bfloat16))
    params["sp_fused"] = sp_fused
    params["sp_complex"] = sp_complex

    params["ws"] = [linear_init(next(keys), cin, cout)      # Conv1d(k=1) == channel matmul
                    for cin, cout in zip(layers, layers[1:])]
    params["fc1"] = linear_init(next(keys), layers[-1], fc_dim)
    params["fc2"] = linear_init(next(keys), fc_dim, out_dim)
    return params, layers


# ----------------------------------------------------------------------------
# Forward pass (Pallas for matmul/bias/residual/act hot paths; jnp.fft for FFT)
# ----------------------------------------------------------------------------

def fno1d_forward(x, params):
    B, N, in_dim = x.shape
    L = len(params["ws"])

    # fc0 (channels-last rows); K = in_dim is tiny -> VPU broadcast MAC kernel.
    w0, b0 = params["fc0"]
    h = pallas_linear(x.reshape(B * N, in_dim), w0, b0)     # (B*N, C0) f32

    for i in range(L):
        wf = params["sp_fused"][i]                          # (m, 2cin, 2cout) bf16
        m, two_cin, two_cout = wf.shape
        cin, cout = two_cin // 2, two_cout // 2
        h3 = h.reshape(B, N, cin)                           # channels-last view, no copy

        # --- SpectralConv1d -------------------------------------------------
        # Reference does torch.fft.rfftn over ALL dims of (B, C, N): rfft over
        # space + full fft over channel and batch.  Same transform here, but in
        # the channels-last layout with explicit axes (no activation transpose).
        # TODO(synk): FFT has no Pallas TPU primitive; it stays in jnp.fft.
        xft = jnp.fft.rfft(h3, axis=1)                      # (B, N//2+1, cin)
        xft = jnp.fft.fft(xft, axis=2)
        xft = jnp.fft.fft(xft, axis=0)

        xm = jnp.transpose(xft[:, :m, :], (1, 0, 2))        # (m, B, cin), tiny
        xs = jnp.concatenate([jnp.real(xm), jnp.imag(xm)], axis=-1)  # (m, B, 2cin) f32

        y = pallas_spectral_mul(xs, wf)                     # (m, B, 2cout) f32
        out_modes = jax.lax.complex(y[..., :cout], y[..., cout:])    # (m, B, cout)
        out_modes = jnp.transpose(out_modes, (1, 0, 2))     # (B, m, cout), tiny
        # Zero-pad kept modes to the full spectrum (jnp.pad instead of a
        # zeros+dynamic-update scatter), then irfft over space only.
        out_ft = jnp.pad(out_modes, ((0, 0), (0, (N // 2 + 1) - m), (0, 0)))
        x1 = jnp.fft.irfft(out_ft, n=N, axis=1)             # (B, N, cout) f32

        # --- Pointwise Conv1d (k=1) + residual add + activation, fused ------
        wc, bc = params["ws"][i]
        h = pallas_linear(h, wc, bc,
                          residual=x1.reshape(B * N, cout),
                          relu=(i != L - 1))                # (B*N, cout)

    # fc1 + relu, fc2 (still channels-last rows, no transposes needed).
    w1, b1 = params["fc1"]
    h = pallas_linear(h, w1, b1, relu=True)
    w2, b2 = params["fc2"]
    out = pallas_linear(h, w2, b2)
    return out.reshape(B, N, -1)


# ----------------------------------------------------------------------------
# Pure-jnp reference (mirrors the PyTorch forward exactly) for a sanity check.
# Uses the same (bf16-quantized) weights upcast to f32, NCL layout like torch.
# ----------------------------------------------------------------------------

def fno1d_reference(x, params):
    B, N, _ = x.shape
    w0, b0 = params["fc0"]
    h = x @ w0.astype(jnp.float32) + b0
    xc = jnp.transpose(h, (0, 2, 1))                        # (B, C, N)
    L = len(params["ws"])
    for i in range(L):
        wspec = params["sp_complex"][i]                     # (cin, cout, m)
        cin, cout, m = wspec.shape
        x_ft = jnp.fft.rfftn(xc)
        out = jnp.einsum("bix,iox->box", x_ft[:, :, :m], wspec)
        # Reference allocates out_ft with in_channels; identical here since the
        # module only works with cin == cout (layers=[width]*4).
        out_ft = jnp.zeros((B, cout, N // 2 + 1), jnp.complex64).at[:, :, :m].set(out)
        x1 = jnp.fft.irfft(out_ft, n=N, axis=-1)
        wc, bc = params["ws"][i]
        x2 = jnp.einsum("bin,io->bon", xc, wc.astype(jnp.float32)) + bc[None, :, None]
        xc = x1 + x2
        if i != L - 1:
            xc = jnp.maximum(xc, 0.0)
    h = jnp.transpose(xc, (0, 2, 1))
    w1, b1 = params["fc1"]
    h = jnp.maximum(h @ w1.astype(jnp.float32) + b1, 0.0)
    w2, b2 = params["fc2"]
    return h @ w2.astype(jnp.float32) + b2


if __name__ == "__main__":
    key = jax.random.PRNGKey(0)
    B, N, in_dim, out_dim = 2, 16, 1, 1
    width, fc_dim = 32, 64
    modes = [4, 4, 4]  # one entry per Fourier layer (3 layers for layers=[width]*4)

    kp, kx = jax.random.split(key)
    params, layers = init_params(kp, modes, width, None, fc_dim, in_dim, out_dim)
    x = jax.random.normal(kx, (B, N, in_dim), jnp.float32)

    out = jax.jit(lambda v: fno1d_forward(v, params))(x)
    jax.block_until_ready(out)

    ref = fno1d_reference(x, params)
    err = float(jnp.max(jnp.abs(out - ref)))
    scale = 1.0 + float(jnp.max(jnp.abs(ref)))
    # Kernels run bf16 MXU inputs with f32 accumulation against an all-f32
    # reference (same bf16-quantized weights): tolerance sized for bf16
    # activation rounding (~4e-3 relative) compounded over ~8 matmul layers.
    assert err < 2e-2 * scale, f"mismatch vs reference: {err} (scale {scale})"
    print("KERNEL_OK")
</pallas_src>

<mosaic_0001>
module attributes {stable_mosaic.version = 11 : i64} {
  func.func @kernel(%arg0: i32, %arg1: memref<16x1xf32, #tpu.memory_space<vmem>>, %arg2: memref<1x32xf32, #tpu.memory_space<vmem>>, %arg3: memref<1x32xf32, #tpu.memory_space<vmem>>, %arg4: memref<16x32xf32, #tpu.memory_space<vmem>>) attributes {dimension_semantics = [#tpu.dimension_semantics<parallel>], iteration_bounds = array<i64: 2>, scalar_prefetch = 0 : i64, scratch_operands = 0 : i64, tpu.core_type = #tpu.core_type<tc>, window_params = [{transform_indices = @transform_0, window_bounds = array<i64: 16, 1>}, {pipeline_mode = #tpu.pipeline_mode<synchronous>, transform_indices = @transform_1, window_bounds = array<i64: 1, 32>}, {pipeline_mode = #tpu.pipeline_mode<synchronous>, transform_indices = @transform_2, window_bounds = array<i64: 1, 32>}, {transform_indices = @transform_3, window_bounds = array<i64: 16, 32>}]} {
    %c0 = arith.constant 0 : index
    %c0_0 = arith.constant 0 : index
    %0 = vector.load %arg1[%c0, %c0_0] : memref<16x1xf32, #tpu.memory_space<vmem>>, vector<16x1xf32>
    %c0_1 = arith.constant 0 : index
    %c0_2 = arith.constant 0 : index
    %1 = vector.load %arg2[%c0_1, %c0_2] : memref<1x32xf32, #tpu.memory_space<vmem>>, vector<1x32xf32>
    %cst = arith.constant 0.000000e+00 : f32
    %2 = vector.broadcast %cst : f32 to vector<16x32xf32>
    %3 = vector.broadcast %0 : vector<16x1xf32> to vector<16x32xf32>
    %4 = vector.broadcast %1 : vector<1x32xf32> to vector<16x32xf32>
    %5 = arith.mulf %3, %4 : vector<16x32xf32>
    %6 = arith.addf %2, %5 : vector<16x32xf32>
    %c0_3 = arith.constant 0 : index
    %c0_4 = arith.constant 0 : index
    %7 = vector.load %arg3[%c0_3, %c0_4] : memref<1x32xf32, #tpu.memory_space<vmem>>, vector<1x32xf32>
    %8 = vector.broadcast %7 : vector<1x32xf32> to vector<16x32xf32>
    %9 = arith.addf %6, %8 : vector<16x32xf32>
    %c0_5 = arith.constant 0 : index
    %c0_6 = arith.constant 0 : index
    %10 = vector.load %arg4[%c0_5, %c0_6] : memref<16x32xf32, #tpu.memory_space<vmem>>, vector<16x32xf32>
    tpu.vector_store %arg4[%c0_5, %c0_6], %9 {strides = array<i32>} : memref<16x32xf32, #tpu.memory_space<vmem>>, vector<16x32xf32>,
    return
  }
  func.func @transform_0(%arg0: i32) -> (i32, i32) {
    %c0_i32 = arith.constant 0 : i32
    %c0_i32_0 = arith.constant 0 : i32
    return %arg0, %c0_i32 : i32, i32
  }
  func.func @transform_1(%arg0: i32) -> (i32, i32) {
    %c0_i32 = arith.constant 0 : i32
    %c0_i32_0 = arith.constant 0 : i32
    %c0_i32_1 = arith.constant 0 : i32
    return %c0_i32, %c0_i32_0 : i32, i32
  }
  func.func @transform_2(%arg0: i32) -> (i32, i32) {
    %c0_i32 = arith.constant 0 : i32
    %c0_i32_0 = arith.constant 0 : i32
    %c0_i32_1 = arith.constant 0 : i32
    return %c0_i32, %c0_i32_0 : i32, i32
  }
  func.func @transform_3(%arg0: i32) -> (i32, i32) {
    %c0_i32 = arith.constant 0 : i32
    %c0_i32_0 = arith.constant 0 : i32
    return %arg0, %c0_i32 : i32, i32
  }
}

module attributes {stable_mosaic.version = 11 : i64} {
  func.func @_spectral_kernel(%arg0: i32, %arg1: memref<4x2x64xf32, #tpu.memory_space<vmem>>, %arg2: memref<4x64x64xbf16, #tpu.memory_space<vmem>>, %arg3: memref<4x2x64xf32, #tpu.memory_space<vmem>>) attributes {dimension_semantics = [#tpu.dimension_semantics<arbitrary>], iteration_bounds = array<i64: 1>, scalar_prefetch = 0 : i64, scratch_operands = 0 : i64, tpu.core_type = #tpu.core_type<tc>, window_params = [{pipeline_mode = #tpu.pipeline_mode<synchronous>, transform_indices = @transform_0, window_bounds = array<i64: 4, 2, 64>}, {pipeline_mode = #tpu.pipeline_mode<synchronous>, transform_indices = @transform_1, window_bounds = array<i64: 4, 64, 64>}, {pipeline_mode = #tpu.pipeline_mode<synchronous>, transform_indices = @transform_2, window_bounds = array<i64: 4, 2, 64>}]} {
    %c0 = arith.constant 0 : index
    %c0_0 = arith.constant 0 : index
    %c0_1 = arith.constant 0 : index
    %0 = vector.load %arg1[%c0, %c0_0, %c0_1] : memref<4x2x64xf32, #tpu.memory_space<vmem>>, vector<4x2x64xf32>
    %1 = arith.truncf %0 : vector<4x2x64xf32> to vector<4x2x64xbf16>
    %c0_2 = arith.constant 0 : index
    %c0_3 = arith.constant 0 : index
    %c0_4 = arith.constant 0 : index
    %2 = vector.load %arg2[%c0_2, %c0_3, %c0_4] : memref<4x64x64xbf16, #tpu.memory_space<vmem>>, vector<4x64x64xbf16>
    %cst = arith.constant dense<0.000000e+00> : vector<4x2x64xf32>
    %3 = tpu.matmul %1, %2, %cst {dimension_numbers = #tpu.dot_dimension_numbers<[2], [1], [1], [2], [0, 0, 0, 1, 1, 2], [0], [0]>} : vector<4x2x64xbf16>, vector<4x64x64xbf16>, vector<4x2x64xf32> -> vector<4x2x64xf32>
    %c0_5 = arith.constant 0 : index
    %c0_6 = arith.constant 0 : index
    %c0_7 = arith.constant 0 : index
    %4 = vector.load %arg3[%c0_5, %c0_6, %c0_7] : memref<4x2x64xf32, #tpu.memory_space<vmem>>, vector<4x2x64xf32>
    tpu.vector_store %arg3[%c0_5, %c0_6, %c0_7], %3 {strides = array<i32>} : memref<4x2x64xf32, #tpu.memory_space<vmem>>, vector<4x2x64xf32>,
    return
  }
  func.func @transform_0(%arg0: i32) -> (i32, i32, i32) {
    %c0_i32 = arith.constant 0 : i32
    %c0_i32_0 = arith.constant 0 : i32
    %c0_i32_1 = arith.constant 0 : i32
    %c0_i32_2 = arith.constant 0 : i32
    return %c0_i32, %c0_i32_0, %c0_i32_1 : i32, i32, i32
  }
  func.func @transform_1(%arg0: i32) -> (i32, i32, i32) {
    %c0_i32 = arith.constant 0 : i32
    %c0_i32_0 = arith.constant 0 : i32
    %c0_i32_1 = arith.constant 0 : i32
    %c0_i32_2 = arith.constant 0 : i32
    return %c0_i32, %c0_i32_0, %c0_i32_1 : i32, i32, i32
  }
  func.func @transform_2(%arg0: i32) -> (i32, i32, i32) {
    %c0_i32 = arith.constant 0 : i32
    %c0_i32_0 = arith.constant 0 : i32
    %c0_i32_1 = arith.constant 0 : i32
    %c0_i32_2 = arith.constant 0 : i32
    return %c0_i32, %c0_i32_0, %c0_i32_1 : i32, i32, i32
  }
}

module attributes {stable_mosaic.version = 11 : i64} {
  func.func @kernel(%arg0: i32, %arg1: memref<16x32xf32, #tpu.memory_space<vmem>>, %arg2: memref<32x32xbf16, #tpu.memory_space<vmem>>, %arg3: memref<1x32xf32, #tpu.memory_space<vmem>>, %arg4: memref<16x32xf32, #tpu.memory_space<vmem>>, %arg5: memref<16x32xf32, #tpu.memory_space<vmem>>) attributes {dimension_semantics = [#tpu.dimension_semantics<parallel>], iteration_bounds = array<i64: 2>, scalar_prefetch = 0 : i64, scratch_operands = 0 : i64, tpu.core_type = #tpu.core_type<tc>, window_params = [{transform_indices = @transform_0, window_bounds = array<i64: 16, 32>}, {pipeline_mode = #tpu.pipeline_mode<synchronous>, transform_indices = @transform_1, window_bounds = array<i64: 32, 32>}, {pipeline_mode = #tpu.pipeline_mode<synchronous>, transform_indices = @transform_2, window_bounds = array<i64: 1, 32>}, {transform_indices = @transform_3, window_bounds = array<i64: 16, 32>}, {transform_indices = @transform_4, window_bounds = array<i64: 16, 32>}]} {
    %c0 = arith.constant 0 : index
    %c0_0 = arith.constant 0 : index
    %0 = vector.load %arg1[%c0, %c0_0] : memref<16x32xf32, #tpu.memory_space<vmem>>, vector<16x32xf32>
    %1 = arith.truncf %0 : vector<16x32xf32> to vector<16x32xbf16>
    %c0_1 = arith.constant 0 : index
    %c0_2 = arith.constant 0 : index
    %2 = vector.load %arg2[%c0_1, %c0_2] : memref<32x32xbf16, #tpu.memory_space<vmem>>, vector<32x32xbf16>
    %cst = arith.constant dense<0.000000e+00> : vector<16x32xf32>
    %3 = tpu.matmul %1, %2, %cst {dimension_numbers = #tpu.dot_dimension_numbers<[1], [0], [0], [1], [0, 0, 1, 1], [], []>} : vector<16x32xbf16>, vector<32x32xbf16>, vector<16x32xf32> -> vector<16x32xf32>
    %c0_3 = arith.constant 0 : index
    %c0_4 = arith.constant 0 : index
    %4 = vector.load %arg3[%c0_3, %c0_4] : memref<1x32xf32, #tpu.memory_space<vmem>>, vector<1x32xf32>
    %5 = vector.broadcast %4 : vector<1x32xf32> to vector<16x32xf32>
    %6 = arith.addf %3, %5 : vector<16x32xf32>
    %c0_5 = arith.constant 0 : index
    %c0_6 = arith.constant 0 : index
    %7 = vector.load %arg4[%c0_5, %c0_6] : memref<16x32xf32, #tpu.memory_space<vmem>>, vector<16x32xf32>
    %8 = arith.addf %6, %7 : vector<16x32xf32>
    %cst_7 = arith.constant 0.000000e+00 : f32
    %9 = vector.broadcast %cst_7 : f32 to vector<16x32xf32>
    %10 = arith.maximumf %8, %9 : vector<16x32xf32>
    %c0_8 = arith.constant 0 : index
    %c0_9 = arith.constant 0 : index
    %11 = vector.load %arg5[%c0_8, %c0_9] : memref<16x32xf32, #tpu.memory_space<vmem>>, vector<16x32xf32>
    tpu.vector_store %arg5[%c0_8, %c0_9], %10 {strides = array<i32>} : memref<16x32xf32, #tpu.memory_space<vmem>>, vector<16x32xf32>,
    return
  }
  func.func @transform_0(%arg0: i32) -> (i32, i32) {
    %c0_i32 = arith.constant 0 : i32
    %c0_i32_0 = arith.constant 0 : i32
    return %arg0, %c0_i32 : i32, i32
  }
  func.func @transform_1(%arg0: i32) -> (i32, i32) {
    %c0_i32 = arith.constant 0 : i32
    %c0_i32_0 = arith.constant 0 : i32
    %c0_i32_1 = arith.constant 0 : i32
    return %c0_i32, %c0_i32_0 : i32, i32
  }
  func.func @transform_2(%arg0: i32) -> (i32, i32) {
    %c0_i32 = arith.constant 0 : i32
    %c0_i32_0 = arith.constant 0 : i32
    %c0_i32_1 = arith.constant 0 : i32
    return %c0_i32, %c0_i32_0 : i32, i32
  }
  func.func @transform_3(%arg0: i32) -> (i32, i32) {
    %c0_i32 = arith.constant 0 : i32
    %c0_i32_0 = arith.constant 0 : i32
    return %arg0, %c0_i32 : i32, i32
  }
  func.func @transform_4(%arg0: i32) -> (i32, i32) {
    %c0_i32 = arith.constant 0 : i32
    %c0_i32_0 = arith.constant 0 : i32
    return %arg0, %c0_i32 : i32, i32
  }
}

module attributes {stable_mosaic.version = 11 : i64} {
  func.func @kernel(%arg0: i32, %arg1: memref<16x32xf32, #tpu.memory_space<vmem>>, %arg2: memref<32x32xbf16, #tpu.memory_space<vmem>>, %arg3: memref<1x32xf32, #tpu.memory_space<vmem>>, %arg4: memref<16x32xf32, #tpu.memory_space<vmem>>, %arg5: memref<16x32xf32, #tpu.memory_space<vmem>>) attributes {dimension_semantics = [#tpu.dimension_semantics<parallel>], iteration_bounds = array<i64: 2>, scalar_prefetch = 0 : i64, scratch_operands = 0 : i64, tpu.core_type = #tpu.core_type<tc>, window_params = [{transform_indices = @transform_0, window_bounds = array<i64: 16, 32>}, {pipeline_mode = #tpu.pipeline_mode<synchronous>, transform_indices = @transform_1, window_bounds = array<i64: 32, 32>}, {pipeline_mode = #tpu.pipeline_mode<synchronous>, transform_indices = @transform_2, window_bounds = array<i64: 1, 32>}, {transform_indices = @transform_3, window_bounds = array<i64: 16, 32>}, {transform_indices = @transform_4, window_bounds = array<i64: 16, 32>}]} {
    %c0 = arith.constant 0 : index
    %c0_0 = arith.constant 0 : index
    %0 = vector.load %arg1[%c0, %c0_0] : memref<16x32xf32, #tpu.memory_space<vmem>>, vector<16x32xf32>
    %1 = arith.truncf %0 : vector<16x32xf32> to vector<16x32xbf16>
    %c0_1 = arith.constant 0 : index
    %c0_2 = arith.constant 0 : index
    %2 = vector.load %arg2[%c0_1, %c0_2] : memref<32x32xbf16, #tpu.memory_space<vmem>>, vector<32x32xbf16>
    %cst = arith.constant dense<0.000000e+00> : vector<16x32xf32>
    %3 = tpu.matmul %1, %2, %cst {dimension_numbers = #tpu.dot_dimension_numbers<[1], [0], [0], [1], [0, 0, 1, 1], [], []>} : vector<16x32xbf16>, vector<32x32xbf16>, vector<16x32xf32> -> vector<16x32xf32>
    %c0_3 = arith.constant 0 : index
    %c0_4 = arith.constant 0 : index
    %4 = vector.load %arg3[%c0_3, %c0_4] : memref<1x32xf32, #tpu.memory_space<vmem>>, vector<1x32xf32>
    %5 = vector.broadcast %4 : vector<1x32xf32> to vector<16x32xf32>
    %6 = arith.addf %3, %5 : vector<16x32xf32>
    %c0_5 = arith.constant 0 : index
    %c0_6 = arith.constant 0 : index
    %7 = vector.load %arg4[%c0_5, %c0_6] : memref<16x32xf32, #tpu.memory_space<vmem>>, vector<16x32xf32>
    %8 = arith.addf %6, %7 : vector<16x32xf32>
    %c0_7 = arith.constant 0 : index
    %c0_8 = arith.constant 0 : index
    %9 = vector.load %arg5[%c0_7, %c0_8] : memref<16x32xf32, #tpu.memory_space<vmem>>, vector<16x32xf32>
    tpu.vector_store %arg5[%c0_7, %c0_8], %8 {strides = array<i32>} : memref<16x32xf32, #tpu.memory_space<vmem>>, vector<16x32xf32>,
    return
  }
  func.func @transform_0(%arg0: i32) -> (i32, i32) {
    %c0_i32 = arith.constant 0 : i32
    %c0_i32_0 = arith.constant 0 : i32
    return %arg0, %c0_i32 : i32, i32
  }
  func.func @transform_1(%arg0: i32) -> (i32, i32) {
    %c0_i32 = arith.constant 0 : i32
    %c0_i32_0 = arith.constant 0 : i32
    %c0_i32_1 = arith.constant 0 : i32
    return %c0_i32, %c0_i32_0 : i32, i32
  }
  func.func @transform_2(%arg0: i32) -> (i32, i32) {
    %c0_i32 = arith.constant 0 : i32
    %c0_i32_0 = arith.constant 0 : i32
    %c0_i32_1 = arith.constant 0 : i32
    return %c0_i32, %c0_i32_0 : i32, i32
  }
  func.func @transform_3(%arg0: i32) -> (i32, i32) {
    %c0_i32 = arith.constant 0 : i32
    %c0_i32_0 = arith.constant 0 : i32
    return %arg0, %c0_i32 : i32, i32
  }
  func.func @transform_4(%arg0: i32) -> (i32, i32) {
    %c0_i32 = arith.constant 0 : i32
    %c0_i32_0 = arith.constant 0 : i32
    return %arg0, %c0_i32 : i32, i32
  }
}

module attributes {stable_mosaic.version = 11 : i64} {
  func.func @kernel(%arg0: i32, %arg1: memref<16x32xf32, #tpu.memory_space<vmem>>, %arg2: memref<32x64xbf16, #tpu.memory_space<vmem>>, %arg3: memref<1x64xf32, #tpu.memory_space<vmem>>, %arg4: memref<16x64xf32, #tpu.memory_space<vmem>>) attributes {dimension_semantics = [#tpu.dimension_semantics<parallel>], iteration_bounds = array<i64: 2>, scalar_prefetch = 0 : i64, scratch_operands = 0 : i64, tpu.core_type = #tpu.core_type<tc>, window_params = [{transform_indices = @transform_0, window_bounds = array<i64: 16, 32>}, {pipeline_mode = #tpu.pipeline_mode<synchronous>, transform_indices = @transform_1, window_bounds = array<i64: 32, 64>}, {pipeline_mode = #tpu.pipeline_mode<synchronous>, transform_indices = @transform_2, window_bounds = array<i64: 1, 64>}, {transform_indices = @transform_3, window_bounds = array<i64: 16, 64>}]} {
    %c0 = arith.constant 0 : index
    %c0_0 = arith.constant 0 : index
    %0 = vector.load %arg1[%c0, %c0_0] : memref<16x32xf32, #tpu.memory_space<vmem>>, vector<16x32xf32>
    %1 = arith.truncf %0 : vector<16x32xf32> to vector<16x32xbf16>
    %c0_1 = arith.constant 0 : index
    %c0_2 = arith.constant 0 : index
    %2 = vector.load %arg2[%c0_1, %c0_2] : memref<32x64xbf16, #tpu.memory_space<vmem>>, vector<32x64xbf16>
    %cst = arith.constant dense<0.000000e+00> : vector<16x64xf32>
    %3 = tpu.matmul %1, %2, %cst {dimension_numbers = #tpu.dot_dimension_numbers<[1], [0], [0], [1], [0, 0, 1, 1], [], []>} : vector<16x32xbf16>, vector<32x64xbf16>, vector<16x64xf32> -> vector<16x64xf32>
    %c0_3 = arith.constant 0 : index
    %c0_4 = arith.constant 0 : index
    %4 = vector.load %arg3[%c0_3, %c0_4] : memref<1x64xf32, #tpu.memory_space<vmem>>, vector<1x64xf32>
    %5 = vector.broadcast %4 : vector<1x64xf32> to vector<16x64xf32>
    %6 = arith.addf %3, %5 : vector<16x64xf32>
    %cst_5 = arith.constant 0.000000e+00 : f32
    %7 = vector.broadcast %cst_5 : f32 to vector<16x64xf32>
    %8 = arith.maximumf %6, %7 : vector<16x64xf32>
    %c0_6 = arith.constant 0 : index
    %c0_7 = arith.constant 0 : index
    %9 = vector.load %arg4[%c0_6, %c0_7] : memref<16x64xf32, #tpu.memory_space<vmem>>, vector<16x64xf32>
    tpu.vector_store %arg4[%c0_6, %c0_7], %8 {strides = array<i32>} : memref<16x64xf32, #tpu.memory_space<vmem>>, vector<16x64xf32>,
    return
  }
  func.func @transform_0(%arg0: i32) -> (i32, i32) {
    %c0_i32 = arith.constant 0 : i32
    %c0_i32_0 = arith.constant 0 : i32
    return %arg0, %c0_i32 : i32, i32
  }
  func.func @transform_1(%arg0: i32) -> (i32, i32) {
    %c0_i32 = arith.constant 0 : i32
    %c0_i32_0 = arith.constant 0 : i32
    %c0_i32_1 = arith.constant 0 : i32
    return %c0_i32, %c0_i32_0 : i32, i32
  }
  func.func @transform_2(%arg0: i32) -> (i32, i32) {
    %c0_i32 = arith.constant 0 : i32
    %c0_i32_0 = arith.constant 0 : i32
    %c0_i32_1 = arith.constant 0 : i32
    return %c0_i32, %c0_i32_0 : i32, i32
  }
  func.func @transform_3(%arg0: i32) -> (i32, i32) {
    %c0_i32 = arith.constant 0 : i32
    %c0_i32_0 = arith.constant 0 : i32
    return %arg0, %c0_i32 : i32, i32
  }
}

module attributes {stable_mosaic.version = 11 : i64} {
  func.func @kernel(%arg0: i32, %arg1: memref<16x64xf32, #tpu.memory_space<vmem>>, %arg2: memref<64x1xbf16, #tpu.memory_space<vmem>>, %arg3: memref<1x1xf32, #tpu.memory_space<vmem>>, %arg4: memref<16x1xf32, #tpu.memory_space<vmem>>) attributes {dimension_semantics = [#tpu.dimension_semantics<parallel>], iteration_bounds = array<i64: 2>, scalar_prefetch = 0 : i64, scratch_operands = 0 : i64, tpu.core_type = #tpu.core_type<tc>, window_params = [{transform_indices = @transform_0, window_bounds = array<i64: 16, 64>}, {pipeline_mode = #tpu.pipeline_mode<synchronous>, transform_indices = @transform_1, window_bounds = array<i64: 64, 1>}, {pipeline_mode = #tpu.pipeline_mode<synchronous>, transform_indices = @transform_2, window_bounds = array<i64: 1, 1>}, {transform_indices = @transform_3, window_bounds = array<i64: 16, 1>}]} {
    %c0 = arith.constant 0 : index
    %c0_0 = arith.constant 0 : index
    %0 = vector.load %arg1[%c0, %c0_0] : memref<16x64xf32, #tpu.memory_space<vmem>>, vector<16x64xf32>
    %1 = arith.truncf %0 : vector<16x64xf32> to vector<16x64xbf16>
    %c0_1 = arith.constant 0 : index
    %c0_2 = arith.constant 0 : index
    %2 = vector.load %arg2[%c0_1, %c0_2] : memref<64x1xbf16, #tpu.memory_space<vmem>>, vector<64x1xbf16>
    %cst = arith.constant dense<0.000000e+00> : vector<16x1xf32>
    %3 = tpu.matmul %1, %2, %cst {dimension_numbers = #tpu.dot_dimension_numbers<[1], [0], [0], [1], [0, 0, 1, 1], [], []>} : vector<16x64xbf16>, vector<64x1xbf16>, vector<16x1xf32> -> vector<16x1xf32>
    %c0_3 = arith.constant 0 : index
    %c0_4 = arith.constant 0 : index
    %4 = vector.load %arg3[%c0_3, %c0_4] : memref<1x1xf32, #tpu.memory_space<vmem>>, vector<1x1xf32>
    %5 = vector.broadcast %4 : vector<1x1xf32> to vector<16x1xf32>
    %6 = arith.addf %3, %5 : vector<16x1xf32>
    %c0_5 = arith.constant 0 : index
    %c0_6 = arith.constant 0 : index
    %7 = vector.load %arg4[%c0_5, %c0_6] : memref<16x1xf32, #tpu.memory_space<vmem>>, vector<16x1xf32>
    tpu.vector_store %arg4[%c0_5, %c0_6], %6 {strides = array<i32>} : memref<16x1xf32, #tpu.memory_space<vmem>>, vector<16x1xf32>,
    return
  }
  func.func @transform_0(%arg0: i32) -> (i32, i32) {
    %c0_i32 = arith.constant 0 : i32
    %c0_i32_0 = arith.constant 0 : i32
    return %arg0, %c0_i32 : i32, i32
  }
  func.func @transform_1(%arg0: i32) -> (i32, i32) {
    %c0_i32 = arith.constant 0 : i32
    %c0_i32_0 = arith.constant 0 : i32
    %c0_i32_1 = arith.constant 0 : i32
    return %c0_i32, %c0_i32_0 : i32, i32
  }
  func.func @transform_2(%arg0: i32) -> (i32, i32) {
    %c0_i32 = arith.constant 0 : i32
    %c0_i32_0 = arith.constant 0 : i32
    %c0_i32_1 = arith.constant 0 : i32
    return %c0_i32, %c0_i32_0 : i32, i32
  }
  func.func @transform_3(%arg0: i32) -> (i32, i32) {
    %c0_i32 = arith.constant 0 : i32
    %c0_i32_0 = arith.constant 0 : i32
    return %arg0, %c0_i32 : i32, i32
  }
}

</mosaic_0001>

<llo_original>
// kernel: _lambda_.9
$region0: #{_lambda_.9}
  #allocation0 [shape = 'u32[]', space=smem, size = 0x4, offset = 0x4, fixed_abs, tag = 'smem constant byte address 0x4 - core index']
  #allocation1 [shape = 'u32[144,128]{1,0:T(1,128)}', space=vmem, size = 0x12000, scoped, tag = 'internal scratch']
  %s0 = inlined_call_operand.vmem [shape: f32[32,1], index: 0, kind: input, shape index: {}]
  %s1 = inlined_call_operand.vmem [shape: f32[1,32], index: 1, kind: input, shape index: {}]
  %s2 = inlined_call_operand.vmem [shape: f32[1,32], index: 2, kind: input, shape index: {}]
  %s3 = inlined_call_operand.vmem [shape: f32[32,32], index: 3, kind: output, shape index: {}]
  %s4 = sld [smem:[#allocation0]]
  $region45: #{_lambda_.9} parent=0
    _
  %s6 = ssub.s32 1, %s4
  %s7 = scalar_select 0, %s6, %s4
  loop: start=0, step=1, limit=4
  $region2: #{_lambda_.9} parent=0 // loop_pre_header
    _
  $region3: #{_lambda_.9} parent=0 // loop_header
    %s9 = sphi 0, %s13
    %p10 = scmp.ge.s32.totalorder %s9, 4
    %s19 = sphi 0, %s21
    %s22 = sphi 0, %s19
    %s23 = sphi 0, %s22
    %s39 = sphi 0, %s23
    %s43 = sphi 0, %s43
    %s45 = sphi 0, %s43
    %s46 = sphi 0, %s45
    %s60 = sphi 0, %s46
    %s64 = sphi 0, %s64
    %s66 = sphi 0, %s64
    %s67 = sphi 0, %s66
    %s81 = sphi 0, %s67
    %s87 = sphi 0, %s89
    %s90 = sphi 0, %s87
    %s91 = sphi 0, %s90
    %s107 = sphi 0, %s91
  $region4: #{_lambda_.9} parent=0 // loop_header_branch
    %12 = sbr.rel (%p10) target = $region8
  $region5: #{_lambda_.9} parent=0 // loop_body
    %s14 = ssub.s32 %s9, 1
    %s15 = ssub.s32 %s9, 2
    %s16 = sadd.s32 %s9, 1
    %s17 = ssub.s32 %s9, %s16
    %p18 = scmp.eq.s32.totalorder %s17, 0
    %s20 = sadd.s32 %s19, 1
    %s21 = scalar_select %p18, %s19, %s20
    %p24 = pneg %p18
    %p25 = scmp.eq.s32.totalorder %s9, 1
    %p26 = por %p24, %p25
    %p27 = scmp.ne.s32.totalorder %s19, %s22
    %p28 = scmp.eq.s32.totalorder %s9, 0
    %p29 = por %p27, %p28
    %p30 = scmp.ne.s32.totalorder %s19, %s22
    %p31 = scmp.eq.s32.totalorder %s14, 1
    %p32 = por %p30, %p31
    %p33 = scmp.ne.s32.totalorder %s22, %s23
    %p34 = scmp.eq.s32.totalorder %s14, 0
    %p35 = por %p33, %p34
    %p36 = scmp.ne.s32.totalorder %s22, %s23
    %p37 = scmp.eq.s32.totalorder %s15, 1
    %p38 = por %p36, %p37
    %p40 = scmp.ne.s32.totalorder %s23, %s39
    %p41 = scmp.eq.s32.totalorder %s15, 0
    %p42 = por %p40, %p41
    %s44 = sadd.s32 %s43, 1
    %p47 = scmp.eq.s32.totalorder %s9, 1
    %p48 = scmp.ne.s32.totalorder %s43, %s45
    %p49 = scmp.eq.s32.totalorder %s9, 0
    %p50 = por %p48, %p49
    %p51 = scmp.ne.s32.totalorder %s43, %s45
    %p52 = scmp.eq.s32.totalorder %s14, 1
    %p53 = por %p51, %p52
    %p54 = scmp.ne.s32.totalorder %s45, %s46
    %p55 = scmp.eq.s32.totalorder %s14, 0
    %p56 = por %p54, %p55
    %p57 = scmp.ne.s32.totalorder %s45, %s46
    %p58 = scmp.eq.s32.totalorder %s15, 1
    %p59 = por %p57, %p58
    %p61 = scmp.ne.s32.totalorder %s46, %s60
    %p62 = scmp.eq.s32.totalorder %s15, 0
    %p63 = por %p61, %p62
    %s65 = sadd.s32 %s64, 1
    %p68 = scmp.eq.s32.totalorder %s9, 1
    %p69 = scmp.ne.s32.totalorder %s64, %s66
    %p70 = scmp.eq.s32.totalorder %s9, 0
    %p71 = por %p69, %p70
    %p72 = scmp.ne.s32.totalorder %s64, %s66
    %p73 = scmp.eq.s32.totalorder %s14, 1
    %p74 = por %p72, %p73
    %p75 = scmp.ne.s32.totalorder %s66, %s67
    %p76 = scmp.eq.s32.totalorder %s14, 0
    %p77 = por %p75, %p76
    %p78 = scmp.ne.s32.totalorder %s66, %s67
    %p79 = scmp.eq.s32.totalorder %s15, 1
    %p80 = por %p78, %p79
    %p82 = scmp.ne.s32.totalorder %s67, %s81
    %p83 = scmp.eq.s32.totalorder %s15, 0
    %p84 = por %p82, %p83
    %s85 = ssub.s32 %s9, %s16
    %p86 = scmp.eq.s32.totalorder %s85, 0
    %s88 = sadd.s32 %s87, 1
    %s89 = scalar_select %p86, %s87, %s88
    %p92 = pneg %p86
    %p93 = scmp.eq.s32.totalorder %s9, 1
    %p94 = por %p92, %p93
    %p95 = scmp.ne.s32.totalorder %s87, %s90
    %p96 = scmp.eq.s32.totalorder %s9, 0
    %p97 = por %p95, %p96
    %p98 = scmp.ne.s32.totalorder %s87, %s90
    %p99 = scmp.eq.s32.totalorder %s14, 1
    %p100 = por %p98, %p99
    %p101 = scmp.ne.s32.totalorder %s90, %s91
    %p102 = scmp.eq.s32.totalorder %s14, 0
    %p103 = por %p101, %p102
    %p104 = scmp.ne.s32.totalorder %s90, %s91
    %p105 = scmp.eq.s32.totalorder %s15, 1
    %p106 = por %p104, %p105
    %p108 = scmp.ne.s32.totalorder %s91, %s107
    %p109 = scmp.eq.s32.totalorder %s15, 0
    %p110 = por %p108, %p109
    %p111 = scmp.le.s32.totalorder 1, %s9
    %p112 = scmp.lt.s32.totalorder %s9, 3
    %p113 = pnand %p111, %p112
    %p114 = pneg %p113
    // Predicated region
    $region9: #{_lambda_.9} parent=5 // pred_check
      _
    $region10: #{_lambda_.9} parent=5 // pred_check_branch
      %116 = sbr.rel (%p113) target = $region12
    $region11: #{_lambda_.9} parent=5 // pred_region
      %s117 = ssub.s32 %s9, 1
      // Predicated region
      $region13: #{_lambda_.9} parent=11 // pred_check
        %p118 = pneg %p56
      $region14: #{_lambda_.9} parent=11 // pred_check_branch
        %120 = sbr.rel (%p118) target = $region16
      $region15: #{_lambda_.9} parent=11 // pred_region
        _
      $region16: #{_lambda_.9} parent=11 // pred_fallthru
        _
      // Predicated region
      $region17: #{_lambda_.9} parent=11 // pred_check
        %p121 = pneg %p77
      $region18: #{_lambda_.9} parent=11 // pred_check_branch
        %123 = sbr.rel (%p121) target = $region20
      $region19: #{_lambda_.9} parent=11 // pred_region
        _
      $region20: #{_lambda_.9} parent=11 // pred_fallthru
        _
    $region12: #{_lambda_.9} parent=5 // pred_fallthru
      _
    %p124 = scmp.lt.s32.totalorder %s9, 2
    // Predicated region
    $region21: #{_lambda_.9} parent=5 // pred_check
      %p125 = pneg %p124
    $region22: #{_lambda_.9} parent=5 // pred_check_branch
      %127 = sbr.rel (%p125) target = $region24
    $region23: #{_lambda_.9} parent=5 // pred_region
      // Predicated region
      $region25: #{_lambda_.9} parent=23 // pred_check
        %p128 = pneg %p29
      $region26: #{_lambda_.9} parent=23 // pred_check_branch
        %130 = sbr.rel (%p128) target = $region28
      $region27: #{_lambda_.9} parent=23 // pred_region
        %s131 = smul.u32 2, %s9
        %p132 = scmp.lt.s32.totalorder %s131, 3
        %s133 = scalar_select %p132, %s131, 3
        %s134 = smul.addr %s133, 8
        %s135 = scalar_lea.vmem %s0, %s134
        %s136 = smul.u32 2, %s9
      $region28: #{_lambda_.9} parent=23 // pred_fallthru
        _
    $region24: #{_lambda_.9} parent=5 // pred_fallthru
      _
    %p137 = scmp.le.s32.totalorder 1, %s9
    %p138 = scmp.lt.s32.totalorder %s9, 3
    %p139 = pnand %p137, %p138
    %p140 = pneg %p139
    // Predicated region
    $region29: #{_lambda_.9} parent=5 // pred_check
      _
    $region30: #{_lambda_.9} parent=5 // pred_check_branch
      %142 = sbr.rel (%p139) target = $region32
    $region31: #{_lambda_.9} parent=5 // pred_region
      %s143 = ssub.s32 %s9, 1
      %s144 = smul.u32 2, %s14
      %p145 = scmp.lt.s32.totalorder %s144, 3
      %s146 = scalar_select %p145, %s144, 3
      %s147 = smul.addr %s146, 8
      %s148 = scalar_lea.vmem %s0, %s147
      %p149 = pneg %p35
      %p150 = pneg %p32
      %p151 = pneg %p56
      %p152 = pneg %p53
      %p153 = pneg %p77
      %p154 = pneg %p74
      %p155 = pneg %p103
      %p156 = pneg %p100
      %s157 = smul.u32 2, %s14
      %p158 = scmp.lt.s32.totalorder %s157, 3
      %s159 = scalar_select %p158, %s157, 3
      %s160 = smul.addr %s159, 8
      %s161 = scalar_lea.vmem %s3, %s160
      %s162 = smul.u32 2, %s14
      %p163 = scmp.lt.s32.totalorder %s162, 3
      %s164 = scalar_select %p163, %s162, 3
      %s165 = smul.addr %s164, 8
      %s166 = scalar_lea.vmem %s0, %s165
      %s167 = smul.u32 2, %s14
      %s168 = smul.u32 2, %s14
      %p169 = scmp.lt.s32.totalorder %s168, 3
      %s170 = scalar_select %p169, %s168, 3
      %s171 = smul.addr %s170, 8
      %s172 = scalar_lea.vmem %s3, %s171
      %s173 = smul.u32 2, %s14
      %v174 = vld [vmem:[%s166] sm:$0xff]
      %v175 = vld [vmem:[%s166 + $0x8] sm:$0xff]
      %v176 = vld [vmem:[%s1] sm:$0x1]
      %178 = vset.pattern.permute.xlu0 0
      %179 = vperm.xlu0 %178, %v174
      %v180 = vpop.permute.xlu0 %179
      %183 = vset.pattern.permute.xlu0 0
      %184 = vperm.xlu0 %183, %v175
      %v185 = vpop.permute.xlu0 %184
      %v188 = vlaneseq
      %v189 = vshrl.u32 %v188, 7
      %v190 = vsub.s32 0, %v189
      %v191 = vrot.slane %v176, %v190
      %v193 = vmul.f32 %v180, %v191
      %v194 = vmul.f32 %v185, %v191
      %v195 = vadd.f32 %v193, 0.0
      %v196 = vadd.f32 %v194, 0.0
      %v197 = vld [vmem:[%s2] sm:$0x1]
      %v199 = vlaneseq
      %v200 = vshrl.u32 %v199, 7
      %v201 = vsub.s32 0, %v200
      %v202 = vrot.slane %v197, %v201
      %v204 = vadd.f32 %v195, %v202
      %v205 = vadd.f32 %v196, %v202
      %vm206 = vcmask 261120
      %207 = vst.msk [vmem:[%s172] sm:$0xff] %vm206, %v204
      %208 = vst.msk [vmem:[%s172 + $0x8] sm:$0xff] %vm206, %v205
      %s209 = smul.u32 2, %s14
      %p210 = scmp.lt.s32.totalorder %s209, 3
      %s211 = scalar_select %p210, %s209, 3
      %s212 = smul.addr %s211, 8
      %s213 = scalar_lea.vmem %s3, %s212
      // Predicated region
      $region33: #{_lambda_.9} parent=31 // pred_check
        %p214 = pneg %p100
      $region34: #{_lambda_.9} parent=31 // pred_check_branch
        %216 = sbr.rel (%p214) target = $region36
      $region35: #{_lambda_.9} parent=31 // pred_region
        %s217 = smul.u32 2, %s14
      $region36: #{_lambda_.9} parent=31 // pred_fallthru
        _
    $region32: #{_lambda_.9} parent=5 // pred_fallthru
      _
    %p218 = scmp.le.s32.totalorder 2, %s9
    // Predicated region
    $region37: #{_lambda_.9} parent=5 // pred_check
      %p219 = pneg %p218
    $region38: #{_lambda_.9} parent=5 // pred_check_branch
      %221 = sbr.rel (%p219) target = $region40
    $region39: #{_lambda_.9} parent=5 // pred_region
      %s222 = ssub.s32 %s9, 2
      // Predicated region
      $region41: #{_lambda_.9} parent=39 // pred_check
        %p223 = pneg %p106
      $region42: #{_lambda_.9} parent=39 // pred_check_branch
        %225 = sbr.rel (%p223) target = $region44
      $region43: #{_lambda_.9} parent=39 // pred_region
        %s226 = smul.u32 2, %s15
        %p227 = scmp.lt.s32.totalorder %s226, 3
        %s228 = scalar_select %p227, %s226, 3
        %s229 = smul.addr %s228, 8
        %s230 = scalar_lea.vmem %s3, %s229
      $region44: #{_lambda_.9} parent=39 // pred_fallthru
        _
    $region40: #{_lambda_.9} parent=5 // pred_fallthru
      _
  $region6: #{_lambda_.9} parent=0 // loop_footer
    %s13 = sadd.s32 1, %s9
  $region7: #{_lambda_.9} parent=0 // loop_footer_branch
    %8 = sbr.rel target = $region3
  $region8: #{_lambda_.9} parent=0 // loop_exit
    _

// kernel: reverse.6
$region0: #{reverse.6}
  #allocation0 [shape = 's32[1]{0}', space=sflag, size = 0x4, scoped, tag = 'scoped memory for reverse.6']
  %s0 = inlined_call_operand.vmem [shape: f32[2,32,7], index: 0, kind: input, shape index: {}]
  %s1 = inlined_call_operand.vmem [shape: f32[2,32,7], index: 1, kind: output, shape index: {}]
  %s2 = scalar_lea.vmem %s0, 12
  %v3 = vld [vmem:[%s2] sm:$0x3]
  %4 = vst [vmem:[%s1] sm:$0x3] %v3
  %s5 = scalar_lea.vmem %s0, 10
  %v6 = vld [vmem:[%s5] sm:$0x3]
  %s7 = scalar_lea.vmem %s1, 2
  %8 = vst [vmem:[%s7] sm:$0x3] %v6
  %s9 = scalar_lea.vmem %s0, 8
  %v10 = vld [vmem:[%s9] sm:$0x3]
  %s11 = scalar_lea.vmem %s1, 4
  %12 = vst [vmem:[%s11] sm:$0x3] %v10
  %s13 = scalar_lea.vmem %s0, 6
  %v14 = vld [vmem:[%s13] sm:$0x3]
  %s15 = scalar_lea.vmem %s1, 6
  %16 = vst [vmem:[%s15] sm:$0x3] %v14
  %s17 = scalar_lea.vmem %s0, 4
  %v18 = vld [vmem:[%s17] sm:$0x3]
  %s19 = scalar_lea.vmem %s1, 8
  %20 = vst [vmem:[%s19] sm:$0x3] %v18
  %s21 = scalar_lea.vmem %s0, 2
  %v22 = vld [vmem:[%s21] sm:$0x3]
  %s23 = scalar_lea.vmem %s1, 10
  %24 = vst [vmem:[%s23] sm:$0x3] %v22
  %v25 = vld [vmem:[%s0] sm:$0x3]
  %s26 = scalar_lea.vmem %s1, 12
  %27 = vst [vmem:[%s26] sm:$0x3] %v25

// kernel: _lambda_.10
$region0: #{_lambda_.10}
  #allocation0 [shape = 'u32[]', space=smem, size = 0x4, offset = 0x4, fixed_abs, tag = 'smem constant byte address 0x4 - core index']
  #allocation1 [shape = 'u32[144,128]{1,0:T(1,128)}', space=vmem, size = 0x12000, scoped, tag = 'internal scratch']
  %s0 = inlined_call_operand.vmem [shape: f32[4,2,64], index: 0, kind: input, shape index: {}]
  %s1 = inlined_call_operand.vmem [shape: bf16[4,64,64], index: 1, kind: input, shape index: {}]
  %s2 = inlined_call_operand.vmem [shape: f32[4,2,64], index: 2, kind: output, shape index: {}]
  %s3 = sld [smem:[#allocation0]]
  $region18: #{_lambda_.10} parent=0
    _
  %s5 = ssub.s32 1, %s3
  %s6 = scalar_select 0, %s5, %s3
  // Predicated region
  $region2: #{_lambda_.10} parent=0 // pred_check
    _
  $region3: #{_lambda_.10} parent=0 // pred_check_branch
    %8 = sbr.rel (0) target = $region5
  $region4: #{_lambda_.10} parent=0 // pred_region
    _
  $region5: #{_lambda_.10} parent=0 // pred_fallthru
    _
  // Predicated region
  $region6: #{_lambda_.10} parent=0 // pred_check
    _
  $region7: #{_lambda_.10} parent=0 // pred_check_branch
    %10 = sbr.rel (0) target = $region9
  $region8: #{_lambda_.10} parent=0 // pred_region
    _
  $region9: #{_lambda_.10} parent=0 // pred_fallthru
    _
  %v12 = vld [vmem:[%s0] sm:$0x3]
  %v13 = vld [vmem:[%s0 + $0x2] sm:$0x3]
  %v14 = vld [vmem:[%s0 + $0x4] sm:$0x3]
  %v15 = vld [vmem:[%s0 + $0x6] sm:$0x3]
  %v16 = vpack.c.bf16 %v12, %v12
  %v17 = vpack.c.bf16 %v13, %v13
  %v18 = vpack.c.bf16 %v14, %v14
  %v19 = vpack.c.bf16 %v15, %v15
  %v20 = vld [vmem:[%s1] sm:$0xf]
  %v21 = vld [vmem:[%s1 + $0x4] sm:$0xf]
  %v22 = vld [vmem:[%s1 + $0x8] sm:$0xf]
  %v23 = vld [vmem:[%s1 + $0xc] sm:$0xf]
  %v24 = vld [vmem:[%s1 + $0x10] sm:$0xf]
  %v25 = vld [vmem:[%s1 + $0x14] sm:$0xf]
  %v26 = vld [vmem:[%s1 + $0x18] sm:$0xf]
  %v27 = vld [vmem:[%s1 + $0x1c] sm:$0xf]
  %v28 = vld [vmem:[%s1 + $0x20] sm:$0xf]
  %v29 = vld [vmem:[%s1 + $0x24] sm:$0xf]
  %v30 = vld [vmem:[%s1 + $0x28] sm:$0xf]
  %v31 = vld [vmem:[%s1 + $0x2c] sm:$0xf]
  %v32 = vld [vmem:[%s1 + $0x30] sm:$0xf]
  %v33 = vld [vmem:[%s1 + $0x34] sm:$0xf]
  %v34 = vld [vmem:[%s1 + $0x38] sm:$0xf]
  %v35 = vld [vmem:[%s1 + $0x3c] sm:$0xf]
  %v36 = vld [vmem:[%s1 + $0x40] sm:$0xf]
  %v37 = vld [vmem:[%s1 + $0x44] sm:$0xf]
  %v38 = vld [vmem:[%s1 + $0x48] sm:$0xf]
  %v39 = vld [vmem:[%s1 + $0x4c] sm:$0xf]
  %v40 = vld [vmem:[%s1 + $0x50] sm:$0xf]
  %v41 = vld [vmem:[%s1 + $0x54] sm:$0xf]
  %v42 = vld [vmem:[%s1 + $0x58] sm:$0xf]
  %v43 = vld [vmem:[%s1 + $0x5c] sm:$0xf]
  %v44 = vld [vmem:[%s1 + $0x60] sm:$0xf]
  %v45 = vld [vmem:[%s1 + $0x64] sm:$0xf]
  %v46 = vld [vmem:[%s1 + $0x68] sm:$0xf]
  %v47 = vld [vmem:[%s1 + $0x6c] sm:$0xf]
  %v48 = vld [vmem:[%s1 + $0x70] sm:$0xf]
  %v49 = vld [vmem:[%s1 + $0x74] sm:$0xf]
  %v50 = vld [vmem:[%s1 + $0x78] sm:$0xf]
  %v51 = vld [vmem:[%s1 + $0x7c] sm:$0xf]
  %v60 = vunpack.c.l.b16 %v20
  %v61 = vunpack.c.l.b16 %v21
  %v62 = vunpack.c.l.b16 %v22
  %v63 = vunpack.c.l.b16 %v23
  %v64 = vunpack.c.l.b16 %v24
  %v65 = vunpack.c.l.b16 %v25
  %v66 = vunpack.c.l.b16 %v26
  %v67 = vunpack.c.l.b16 %v27
  %v68 = vpack.c.b16 %v61, %v60
  %v69 = vpack.c.b16 %v63, %v62
  %v70 = vpack.c.b16 %v65, %v64
  %v71 = vpack.c.b16 %v67, %v66
  %vm76 = vcmask 523264
  %v78 = vsel %vm76, %v16, 0
  %80 = vmatprep.subr.bf16.mxu0 0
  %81 = vmatpush1.bf16.msra.mxu0 %v68
  %82 = vmatprep.subr.bf16.mxu0 0
  %83 = vmatpush1.bf16.msra.mxu0 %v69
  %84 = vmatprep.subr.bf16.mxu0 0
  %85 = vmatpush1.bf16.msra.mxu0 %v70
  %86 = vmatprep.subr.bf16.mxu0 0
  %87 = vmatpush1.bf16.msra.mxu0 %v71
  %88 = vmatprep.subr.bf16.mxu0 0
  %89 = vmatpush1.bf16.msra.mxu0 0
  %90 = vmatprep.subr.bf16.mxu0 0
  %91 = vmatpush1.bf16.msra.mxu0 0
  %92 = vmatprep.subr.bf16.mxu0 0
  %93 = vmatpush1.bf16.msra.mxu0 0
  %94 = vmatprep.subr.bf16.mxu0 0
  %95 = vmatpush1.bf16.msra.mxu0 0
  %96 = vmatprep.subr.bf16.mxu0 0
  %97 = vmatpush1.bf16.msra.mxu0 0
  %98 = vmatprep.subr.bf16.mxu0 0
  %99 = vmatpush1.bf16.msra.mxu0 0
  %100 = vmatprep.subr.bf16.mxu0 0
  %101 = vmatpush1.bf16.msra.mxu0 0
  %102 = vmatprep.subr.bf16.mxu0 0
  %103 = vmatpush1.bf16.msra.mxu0 0
  %104 = vmatprep.subr.bf16.mxu0 0
  %105 = vmatpush1.bf16.msra.mxu0 0
  %106 = vmatprep.subr.bf16.mxu0 0
  %107 = vmatpush1.bf16.msra.mxu0 0
  %108 = vmatprep.subr.bf16.mxu0 0
  %109 = vmatpush1.bf16.msra.mxu0 0
  %110 = vmatprep.subr.bf16.mxu0 0
  %111 = vmatpush1.bf16.msra.mxu0 0
  %112 = vmatprep.mubr.bf16.mxu0 0
  %113 = vmatmul.mubr.bf16.gmra.mrb[0].mxu0 %v78
  %v114 = vpop.f32.mrb[0].mxu0
  %v115 = vadd.f32 0.0, %v114
  %v116 = vpop.f32.mrb[0].mxu0
  %v117 = vpop.f32.mrb[0].mxu0
  %v118 = vpop.f32.mrb[0].mxu0
  %119 = vdwg.mxu0
  %v128 = vunpack.c.l.b16 %v28
  %v129 = vunpack.c.l.b16 %v29
  %v130 = vunpack.c.l.b16 %v30
  %v131 = vunpack.c.l.b16 %v31
  %v132 = vunpack.c.l.b16 %v32
  %v133 = vunpack.c.l.b16 %v33
  %v134 = vunpack.c.l.b16 %v34
  %v135 = vunpack.c.l.b16 %v35
  %v136 = vpack.c.b16 %v129, %v128
  %v137 = vpack.c.b16 %v131, %v130
  %v138 = vpack.c.b16 %v133, %v132
  %v139 = vpack.c.b16 %v135, %v134
  %v145 = vsel %vm76, %v17, 0
  %147 = vmatprep.subr.bf16.mxu0 0
  %148 = vmatpush1.bf16.msra.mxu0 %v136
  %149 = vmatprep.subr.bf16.mxu0 0
  %150 = vmatpush1.bf16.msra.mxu0 %v137
  %151 = vmatprep.subr.bf16.mxu0 0
  %152 = vmatpush1.bf16.msra.mxu0 %v138
  %153 = vmatprep.subr.bf16.mxu0 0
  %154 = vmatpush1.bf16.msra.mxu0 %v139
  %155 = vmatprep.subr.bf16.mxu0 0
  %156 = vmatpush1.bf16.msra.mxu0 0
  %157 = vmatprep.subr.bf16.mxu0 0
  %158 = vmatpush1.bf16.msra.mxu0 0
  %159 = vmatprep.subr.bf16.mxu0 0
  %160 = vmatpush1.bf16.msra.mxu0 0
  %161 = vmatprep.subr.bf16.mxu0 0
  %162 = vmatpush1.bf16.msra.mxu0 0
  %163 = vmatprep.subr.bf16.mxu0 0
  %164 = vmatpush1.bf16.msra.mxu0 0
  %165 = vmatprep.subr.bf16.mxu0 0
  %166 = vmatpush1.bf16.msra.mxu0 0
  %167 = vmatprep.subr.bf16.mxu0 0
  %168 = vmatpush1.bf16.msra.mxu0 0
  %169 = vmatprep.subr.bf16.mxu0 0
  %170 = vmatpush1.bf16.msra.mxu0 0
  %171 = vmatprep.subr.bf16.mxu0 0
  %172 = vmatpush1.bf16.msra.mxu0 0
  %173 = vmatprep.subr.bf16.mxu0 0
  %174 = vmatpush1.bf16.msra.mxu0 0
  %175 = vmatprep.subr.bf16.mxu0 0
  %176 = vmatpush1.bf16.msra.mxu0 0
  %177 = vmatprep.subr.bf16.mxu0 0
  %178 = vmatpush1.bf16.msra.mxu0 0
  %179 = vmatprep.mubr.bf16.mxu0 0
  %180 = vmatmul.mubr.bf16.gmra.mrb[0].mxu0 %v145
  %v181 = vpop.f32.mrb[0].mxu0
  %v182 = vadd.f32 0.0, %v181
  %v183 = vpop.f32.mrb[0].mxu0
  %v184 = vpop.f32.mrb[0].mxu0
  %v185 = vpop.f32.mrb[0].mxu0
  %186 = vdwg.mxu0
  %v195 = vunpack.c.l.b16 %v36
  %v196 = vunpack.c.l.b16 %v37
  %v197 = vunpack.c.l.b16 %v38
  %v198 = vunpack.c.l.b16 %v39
  %v199 = vunpack.c.l.b16 %v40
  %v200 = vunpack.c.l.b16 %v41
  %v201 = vunpack.c.l.b16 %v42
  %v202 = vunpack.c.l.b16 %v43
  %v203 = vpack.c.b16 %v196, %v195
  %v204 = vpack.c.b16 %v198, %v197
  %v205 = vpack.c.b16 %v200, %v199
  %v206 = vpack.c.b16 %v202, %v201
  %v212 = vsel %vm76, %v18, 0
  %214 = vmatprep.subr.bf16.mxu0 0
  %215 = vmatpush1.bf16.msra.mxu0 %v203
  %216 = vmatprep.subr.bf16.mxu0 0
  %217 = vmatpush1.bf16.msra.mxu0 %v204
  %218 = vmatprep.subr.bf16.mxu0 0
  %219 = vmatpush1.bf16.msra.mxu0 %v205
  %220 = vmatprep.subr.bf16.mxu0 0
  %221 = vmatpush1.bf16.msra.mxu0 %v206
  %222 = vmatprep.subr.bf16.mxu0 0
  %223 = vmatpush1.bf16.msra.mxu0 0
  %224 = vmatprep.subr.bf16.mxu0 0
  %225 = vmatpush1.bf16.msra.mxu0 0
  %226 = vmatprep.subr.bf16.mxu0 0
  %227 = vmatpush1.bf16.msra.mxu0 0
  %228 = vmatprep.subr.bf16.mxu0 0
  %229 = vmatpush1.bf16.msra.mxu0 0
  %230 = vmatprep.subr.bf16.mxu0 0
  %231 = vmatpush1.bf16.msra.mxu0 0
  %232 = vmatprep.subr.bf16.mxu0 0
  %233 = vmatpush1.bf16.msra.mxu0 0
  %234 = vmatprep.subr.bf16.mxu0 0
  %235 = vmatpush1.bf16.msra.mxu0 0
  %236 = vmatprep.subr.bf16.mxu0 0
  %237 = vmatpush1.bf16.msra.mxu0 0
  %238 = vmatprep.subr.bf16.mxu0 0
  %239 = vmatpush1.bf16.msra.mxu0 0
  %240 = vmatprep.subr.bf16.mxu0 0
  %241 = vmatpush1.bf16.msra.mxu0 0
  %242 = vmatprep.subr.bf16.mxu0 0
  %243 = vmatpush1.bf16.msra.mxu0 0
  %244 = vmatprep.subr.bf16.mxu0 0
  %245 = vmatpush1.bf16.msra.mxu0 0
  %246 = vmatprep.mubr.bf16.mxu0 0
  %247 = vmatmul.mubr.bf16.gmra.mrb[0].mxu0 %v212
  %v248 = vpop.f32.mrb[0].mxu0
  %v249 = vadd.f32 0.0, %v248
  %v250 = vpop.f32.mrb[0].mxu0
  %v251 = vpop.f32.mrb[0].mxu0
  %v252 = vpop.f32.mrb[0].mxu0
  %253 = vdwg.mxu0
  %v262 = vunpack.c.l.b16 %v44
  %v263 = vunpack.c.l.b16 %v45
  %v264 = vunpack.c.l.b16 %v46
  %v265 = vunpack.c.l.b16 %v47
  %v266 = vunpack.c.l.b16 %v48
  %v267 = vunpack.c.l.b16 %v49
  %v268 = vunpack.c.l.b16 %v50
  %v269 = vunpack.c.l.b16 %v51
  %v270 = vpack.c.b16 %v263, %v262
  %v271 = vpack.c.b16 %v265, %v264
  %v272 = vpack.c.b16 %v267, %v266
  %v273 = vpack.c.b16 %v269, %v268
  %v279 = vsel %vm76, %v19, 0
  %281 = vmatprep.subr.bf16.mxu0 0
  %282 = vmatpush1.bf16.msra.mxu0 %v270
  %283 = vmatprep.subr.bf16.mxu0 0
  %284 = vmatpush1.bf16.msra.mxu0 %v271
  %285 = vmatprep.subr.bf16.mxu0 0
  %286 = vmatpush1.bf16.msra.mxu0 %v272
  %287 = vmatprep.subr.bf16.mxu0 0
  %288 = vmatpush1.bf16.msra.mxu0 %v273
  %289 = vmatprep.subr.bf16.mxu0 0
  %290 = vmatpush1.bf16.msra.mxu0 0
  %291 = vmatprep.subr.bf16.mxu0 0
  %292 = vmatpush1.bf16.msra.mxu0 0
  %293 = vmatprep.subr.bf16.mxu0 0
  %294 = vmatpush1.bf16.msra.mxu0 0
  %295 = vmatprep.subr.bf16.mxu0 0
  %296 = vmatpush1.bf16.msra.mxu0 0
  %297 = vmatprep.subr.bf16.mxu0 0
  %298 = vmatpush1.bf16.msra.mxu0 0
  %299 = vmatprep.subr.bf16.mxu0 0
  %300 = vmatpush1.bf16.msra.mxu0 0
  %301 = vmatprep.subr.bf16.mxu0 0
  %302 = vmatpush1.bf16.msra.mxu0 0
  %303 = vmatprep.subr.bf16.mxu0 0
  %304 = vmatpush1.bf16.msra.mxu0 0
  %305 = vmatprep.subr.bf16.mxu0 0
  %306 = vmatpush1.bf16.msra.mxu0 0
  %307 = vmatprep.subr.bf16.mxu0 0
  %308 = vmatpush1.bf16.msra.mxu0 0
  %309 = vmatprep.subr.bf16.mxu0 0
  %310 = vmatpush1.bf16.msra.mxu0 0
  %311 = vmatprep.subr.bf16.mxu0 0
  %312 = vmatpush1.bf16.msra.mxu0 0
  %313 = vmatprep.mubr.bf16.mxu0 0
  %314 = vmatmul.mubr.bf16.gmra.mrb[0].mxu0 %v279
  %v315 = vpop.f32.mrb[0].mxu0
  %v316 = vadd.f32 0.0, %v315
  %v317 = vpop.f32.mrb[0].mxu0
  %v318 = vpop.f32.mrb[0].mxu0
  %v319 = vpop.f32.mrb[0].mxu0
  %320 = vdwg.mxu0
  %vm321 = vcmask 517120
  %322 = vst.msk [vmem:[%s2] sm:$0x3] %vm321, %v115
  %323 = vst.msk [vmem:[%s2 + $0x2] sm:$0x3] %vm321, %v182
  %324 = vst.msk [vmem:[%s2 + $0x4] sm:$0x3] %vm321, %v249
  %325 = vst.msk [vmem:[%s2 + $0x6] sm:$0x3] %vm321, %v316
  // Predicated region
  $region10: #{_lambda_.10} parent=0 // pred_check
    _
  $region11: #{_lambda_.10} parent=0 // pred_check_branch
    %327 = sbr.rel (0) target = $region13
  $region12: #{_lambda_.10} parent=0 // pred_region
    _
  $region13: #{_lambda_.10} parent=0 // pred_fallthru
    _
  // Predicated region
  $region14: #{_lambda_.10} parent=0 // pred_check
    _
  $region15: #{_lambda_.10} parent=0 // pred_check_branch
    %329 = sbr.rel (0) target = $region17
  $region16: #{_lambda_.10} parent=0 // pred_region
    _
  $region17: #{_lambda_.10} parent=0 // pred_fallthru
    _

// kernel: _lambda_.11
$region0: #{_lambda_.11}
  #allocation0 [shape = 'u32[]', space=smem, size = 0x4, offset = 0x4, fixed_abs, tag = 'smem constant byte address 0x4 - core index']
  #allocation1 [shape = 'u32[144,128]{1,0:T(1,128)}', space=vmem, size = 0x12000, scoped, tag = 'internal scratch']
  %s0 = inlined_call_operand.vmem [shape: f32[32,32], index: 0, kind: input, shape index: {}]
  %s1 = inlined_call_operand.vmem [shape: bf16[32,32], index: 1, kind: input, shape index: {}]
  %s2 = inlined_call_operand.vmem [shape: f32[1,32], index: 2, kind: input, shape index: {}]
  %s3 = inlined_call_operand.vmem [shape: f32[32,32], index: 3, kind: input, shape index: {}]
  %s4 = inlined_call_operand.vmem [shape: f32[32,32], index: 4, kind: output, shape index: {}]
  %s5 = sld [smem:[#allocation0]]
  $region49: #{_lambda_.11} parent=0
    _
  %s7 = ssub.s32 1, %s5
  %s8 = scalar_select 0, %s7, %s5
  loop: start=0, step=1, limit=4
  $region2: #{_lambda_.11} parent=0 // loop_pre_header
    _
  $region3: #{_lambda_.11} parent=0 // loop_header
    %s10 = sphi 0, %s14
    %p11 = scmp.ge.s32.totalorder %s10, 4
    %s20 = sphi 0, %s22
    %s23 = sphi 0, %s20
    %s24 = sphi 0, %s23
    %s40 = sphi 0, %s24
    %s44 = sphi 0, %s44
    %s46 = sphi 0, %s44
    %s47 = sphi 0, %s46
    %s61 = sphi 0, %s47
    %s65 = sphi 0, %s65
    %s67 = sphi 0, %s65
    %s68 = sphi 0, %s67
    %s82 = sphi 0, %s68
    %s88 = sphi 0, %s90
    %s91 = sphi 0, %s88
    %s92 = sphi 0, %s91
    %s108 = sphi 0, %s92
    %s114 = sphi 0, %s116
    %s117 = sphi 0, %s114
    %s118 = sphi 0, %s117
    %s134 = sphi 0, %s118
  $region4: #{_lambda_.11} parent=0 // loop_header_branch
    %13 = sbr.rel (%p11) target = $region8
  $region5: #{_lambda_.11} parent=0 // loop_body
    %s15 = ssub.s32 %s10, 1
    %s16 = ssub.s32 %s10, 2
    %s17 = sadd.s32 %s10, 1
    %s18 = ssub.s32 %s10, %s17
    %p19 = scmp.eq.s32.totalorder %s18, 0
    %s21 = sadd.s32 %s20, 1
    %s22 = scalar_select %p19, %s20, %s21
    %p25 = pneg %p19
    %p26 = scmp.eq.s32.totalorder %s10, 1
    %p27 = por %p25, %p26
    %p28 = scmp.ne.s32.totalorder %s20, %s23
    %p29 = scmp.eq.s32.totalorder %s10, 0
    %p30 = por %p28, %p29
    %p31 = scmp.ne.s32.totalorder %s20, %s23
    %p32 = scmp.eq.s32.totalorder %s15, 1
    %p33 = por %p31, %p32
    %p34 = scmp.ne.s32.totalorder %s23, %s24
    %p35 = scmp.eq.s32.totalorder %s15, 0
    %p36 = por %p34, %p35
    %p37 = scmp.ne.s32.totalorder %s23, %s24
    %p38 = scmp.eq.s32.totalorder %s16, 1
    %p39 = por %p37, %p38
    %p41 = scmp.ne.s32.totalorder %s24, %s40
    %p42 = scmp.eq.s32.totalorder %s16, 0
    %p43 = por %p41, %p42
    %s45 = sadd.s32 %s44, 1
    %p48 = scmp.eq.s32.totalorder %s10, 1
    %p49 = scmp.ne.s32.totalorder %s44, %s46
    %p50 = scmp.eq.s32.totalorder %s10, 0
    %p51 = por %p49, %p50
    %p52 = scmp.ne.s32.totalorder %s44, %s46
    %p53 = scmp.eq.s32.totalorder %s15, 1
    %p54 = por %p52, %p53
    %p55 = scmp.ne.s32.totalorder %s46, %s47
    %p56 = scmp.eq.s32.totalorder %s15, 0
    %p57 = por %p55, %p56
    %p58 = scmp.ne.s32.totalorder %s46, %s47
    %p59 = scmp.eq.s32.totalorder %s16, 1
    %p60 = por %p58, %p59
    %p62 = scmp.ne.s32.totalorder %s47, %s61
    %p63 = scmp.eq.s32.totalorder %s16, 0
    %p64 = por %p62, %p63
    %s66 = sadd.s32 %s65, 1
    %p69 = scmp.eq.s32.totalorder %s10, 1
    %p70 = scmp.ne.s32.totalorder %s65, %s67
    %p71 = scmp.eq.s32.totalorder %s10, 0
    %p72 = por %p70, %p71
    %p73 = scmp.ne.s32.totalorder %s65, %s67
    %p74 = scmp.eq.s32.totalorder %s15, 1
    %p75 = por %p73, %p74
    %p76 = scmp.ne.s32.totalorder %s67, %s68
    %p77 = scmp.eq.s32.totalorder %s15, 0
    %p78 = por %p76, %p77
    %p79 = scmp.ne.s32.totalorder %s67, %s68
    %p80 = scmp.eq.s32.totalorder %s16, 1
    %p81 = por %p79, %p80
    %p83 = scmp.ne.s32.totalorder %s68, %s82
    %p84 = scmp.eq.s32.totalorder %s16, 0
    %p85 = por %p83, %p84
    %s86 = ssub.s32 %s10, %s17
    %p87 = scmp.eq.s32.totalorder %s86, 0
    %s89 = sadd.s32 %s88, 1
    %s90 = scalar_select %p87, %s88, %s89
    %p93 = pneg %p87
    %p94 = scmp.eq.s32.totalorder %s10, 1
    %p95 = por %p93, %p94
    %p96 = scmp.ne.s32.totalorder %s88, %s91
    %p97 = scmp.eq.s32.totalorder %s10, 0
    %p98 = por %p96, %p97
    %p99 = scmp.ne.s32.totalorder %s88, %s91
    %p100 = scmp.eq.s32.totalorder %s15, 1
    %p101 = por %p99, %p100
    %p102 = scmp.ne.s32.totalorder %s91, %s92
    %p103 = scmp.eq.s32.totalorder %s15, 0
    %p104 = por %p102, %p103
    %p105 = scmp.ne.s32.totalorder %s91, %s92
    %p106 = scmp.eq.s32.totalorder %s16, 1
    %p107 = por %p105, %p106
    %p109 = scmp.ne.s32.totalorder %s92, %s108
    %p110 = scmp.eq.s32.totalorder %s16, 0
    %p111 = por %p109, %p110
    %s112 = ssub.s32 %s10, %s17
    %p113 = scmp.eq.s32.totalorder %s112, 0
    %s115 = sadd.s32 %s114, 1
    %s116 = scalar_select %p113, %s114, %s115
    %p119 = pneg %p113
    %p120 = scmp.eq.s32.totalorder %s10, 1
    %p121 = por %p119, %p120
    %p122 = scmp.ne.s32.totalorder %s114, %s117
    %p123 = scmp.eq.s32.totalorder %s10, 0
    %p124 = por %p122, %p123
    %p125 = scmp.ne.s32.totalorder %s114, %s117
    %p126 = scmp.eq.s32.totalorder %s15, 1
    %p127 = por %p125, %p126
    %p128 = scmp.ne.s32.totalorder %s117, %s118
    %p129 = scmp.eq.s32.totalorder %s15, 0
    %p130 = por %p128, %p129
    %p131 = scmp.ne.s32.totalorder %s117, %s118
    %p132 = scmp.eq.s32.totalorder %s16, 1
    %p133 = por %p131, %p132
    %p135 = scmp.ne.s32.totalorder %s118, %s134
    %p136 = scmp.eq.s32.totalorder %s16, 0
    %p137 = por %p135, %p136
    %p138 = scmp.le.s32.totalorder 1, %s10
    %p139 = scmp.lt.s32.totalorder %s10, 3
    %p140 = pnand %p138, %p139
    %p141 = pneg %p140
    // Predicated region
    $region9: #{_lambda_.11} parent=5 // pred_check
      _
    $region10: #{_lambda_.11} parent=5 // pred_check_branch
      %143 = sbr.rel (%p140) target = $region12
    $region11: #{_lambda_.11} parent=5 // pred_region
      %s144 = ssub.s32 %s10, 1
      // Predicated region
      $region13: #{_lambda_.11} parent=11 // pred_check
        %p145 = pneg %p57
      $region14: #{_lambda_.11} parent=11 // pred_check_branch
        %147 = sbr.rel (%p145) target = $region16
      $region15: #{_lambda_.11} parent=11 // pred_region
        _
      $region16: #{_lambda_.11} parent=11 // pred_fallthru
        _
      // Predicated region
      $region17: #{_lambda_.11} parent=11 // pred_check
        %p148 = pneg %p78
      $region18: #{_lambda_.11} parent=11 // pred_check_branch
        %150 = sbr.rel (%p148) target = $region20
      $region19: #{_lambda_.11} parent=11 // pred_region
        _
      $region20: #{_lambda_.11} parent=11 // pred_fallthru
        _
    $region12: #{_lambda_.11} parent=5 // pred_fallthru
      _
    %p151 = scmp.lt.s32.totalorder %s10, 2
    // Predicated region
    $region21: #{_lambda_.11} parent=5 // pred_check
      %p152 = pneg %p151
    $region22: #{_lambda_.11} parent=5 // pred_check_branch
      %154 = sbr.rel (%p152) target = $region24
    $region23: #{_lambda_.11} parent=5 // pred_region
      // Predicated region
      $region25: #{_lambda_.11} parent=23 // pred_check
        %p155 = pneg %p30
      $region26: #{_lambda_.11} parent=23 // pred_check_branch
        %157 = sbr.rel (%p155) target = $region28
      $region27: #{_lambda_.11} parent=23 // pred_region
        %s158 = smul.u32 2, %s10
        %p159 = scmp.lt.s32.totalorder %s158, 3
        %s160 = scalar_select %p159, %s158, 3
        %s161 = smul.addr %s160, 8
        %s162 = scalar_lea.vmem %s0, %s161
        %s163 = smul.u32 2, %s10
      $region28: #{_lambda_.11} parent=23 // pred_fallthru
        _
      // Predicated region
      $region29: #{_lambda_.11} parent=23 // pred_check
        %p164 = pneg %p98
      $region30: #{_lambda_.11} parent=23 // pred_check_branch
        %166 = sbr.rel (%p164) target = $region32
      $region31: #{_lambda_.11} parent=23 // pred_region
        %s167 = smul.u32 2, %s10
        %p168 = scmp.lt.s32.totalorder %s167, 3
        %s169 = scalar_select %p168, %s167, 3
        %s170 = smul.addr %s169, 8
        %s171 = scalar_lea.vmem %s3, %s170
        %s172 = smul.u32 2, %s10
      $region32: #{_lambda_.11} parent=23 // pred_fallthru
        _
    $region24: #{_lambda_.11} parent=5 // pred_fallthru
      _
    %p173 = scmp.le.s32.totalorder 1, %s10
    %p174 = scmp.lt.s32.totalorder %s10, 3
    %p175 = pnand %p173, %p174
    %p176 = pneg %p175
    // Predicated region
    $region33: #{_lambda_.11} parent=5 // pred_check
      _
    $region34: #{_lambda_.11} parent=5 // pred_check_branch
      %178 = sbr.rel (%p175) target = $region36
    $region35: #{_lambda_.11} parent=5 // pred_region
      %s179 = ssub.s32 %s10, 1
      %s180 = smul.u32 2, %s15
      %p181 = scmp.lt.s32.totalorder %s180, 3
      %s182 = scalar_select %p181, %s180, 3
      %s183 = smul.addr %s182, 8
      %s184 = scalar_lea.vmem %s0, %s183
      %p185 = pneg %p36
      %p186 = pneg %p33
      %p187 = pneg %p57
      %p188 = pneg %p54
      %p189 = pneg %p78
      %p190 = pneg %p75
      %s191 = smul.u32 2, %s15
      %p192 = scmp.lt.s32.totalorder %s191, 3
      %s193 = scalar_select %p192, %s191, 3
      %s194 = smul.addr %s193, 8
      %s195 = scalar_lea.vmem %s3, %s194
      %p196 = pneg %p104
      %p197 = pneg %p101
      %p198 = pneg %p130
      %p199 = pneg %p127
      %s200 = smul.u32 2, %s15
      %p201 = scmp.lt.s32.totalorder %s200, 3
      %s202 = scalar_select %p201, %s200, 3
      %s203 = smul.addr %s202, 8
      %s204 = scalar_lea.vmem %s4, %s203
      %s205 = smul.u32 2, %s15
      %p206 = scmp.lt.s32.totalorder %s205, 3
      %s207 = scalar_select %p206, %s205, 3
      %s208 = smul.addr %s207, 8
      %s209 = scalar_lea.vmem %s0, %s208
      %s210 = smul.u32 2, %s15
      %s211 = smul.u32 2, %s15
      %p212 = scmp.lt.s32.totalorder %s211, 3
      %s213 = scalar_select %p212, %s211, 3
      %s214 = smul.addr %s213, 8
      %s215 = scalar_lea.vmem %s3, %s214
      %s216 = smul.u32 2, %s15
      %s217 = smul.u32 2, %s15
      %p218 = scmp.lt.s32.totalorder %s217, 3
      %s219 = scalar_select %p218, %s217, 3
      %s220 = smul.addr %s219, 8
      %s221 = scalar_lea.vmem %s4, %s220
      %s222 = smul.u32 2, %s15
      %v224 = vld [vmem:[%s209] sm:$0xff]
      %v225 = vld [vmem:[%s209 + $0x8] sm:$0xff]
      %v226 = vpack.c.bf16 %v225, %v224
      %v227 = vld [vmem:[%s1] sm:$0xf]
      %v228 = vld [vmem:[%s1 + $0x4] sm:$0xf]
      %v229 = vld [vmem:[%s1 + $0x8] sm:$0xf]
      %v230 = vld [vmem:[%s1 + $0xc] sm:$0xf]
      %v231 = vld [vmem:[%s2] sm:$0x1]
      %v233 = vlaneseq
      %v234 = vshrl.u32 %v233, 7
      %v235 = vsub.s32 0, %v234
      %v236 = vrot.slane %v231, %v235
      %v242 = vunpack.c.l.b16 %v227
      %v243 = vunpack.c.l.b16 %v228
      %v244 = vunpack.c.l.b16 %v229
      %v245 = vunpack.c.l.b16 %v230
      %v246 = vpack.c.b16 %v243, %v242
      %v247 = vpack.c.b16 %v245, %v244
      %vm250 = vcmask 261120
      %v252 = vsel %vm250, %v226, 0
      %254 = vmatprep.subr.bf16.mxu0 0
      %255 = vmatpush1.bf16.msra.mxu0 %v246
      %256 = vmatprep.subr.bf16.mxu0 0
      %257 = vmatpush1.bf16.msra.mxu0 %v247
      %258 = vmatprep.subr.bf16.mxu0 0
      %259 = vmatpush1.bf16.msra.mxu0 0
      %260 = vmatprep.subr.bf16.mxu0 0
      %261 = vmatpush1.bf16.msra.mxu0 0
      %262 = vmatprep.subr.bf16.mxu0 0
      %263 = vmatpush1.bf16.msra.mxu0 0
      %264 = vmatprep.subr.bf16.mxu0 0
      %265 = vmatpush1.bf16.msra.mxu0 0
      %266 = vmatprep.subr.bf16.mxu0 0
      %267 = vmatpush1.bf16.msra.mxu0 0
      %268 = vmatprep.subr.bf16.mxu0 0
      %269 = vmatpush1.bf16.msra.mxu0 0
      %270 = vmatprep.subr.bf16.mxu0 0
      %271 = vmatpush1.bf16.msra.mxu0 0
      %272 = vmatprep.subr.bf16.mxu0 0
      %273 = vmatpush1.bf16.msra.mxu0 0
      %274 = vmatprep.subr.bf16.mxu0 0
      %275 = vmatpush1.bf16.msra.mxu0 0
      %276 = vmatprep.subr.bf16.mxu0 0
      %277 = vmatpush1.bf16.msra.mxu0 0
      %278 = vmatprep.subr.bf16.mxu0 0
      %279 = vmatpush1.bf16.msra.mxu0 0
      %280 = vmatprep.subr.bf16.mxu0 0
      %281 = vmatpush1.bf16.msra.mxu0 0
      %282 = vmatprep.subr.bf16.mxu0 0
      %283 = vmatpush1.bf16.msra.mxu0 0
      %284 = vmatprep.subr.bf16.mxu0 0
      %285 = vmatpush1.bf16.msra.mxu0 0
      %286 = vmatprep.mubr.bf16.mxu0 0
      %287 = vmatmul.mubr.bf16.gmra.mrb[0].mxu0 %v252
      %v288 = vpop.f32.mrb[0].mxu0
      %v289 = vadd.f32 %v236, %v288
      %v290 = vpop.f32.mrb[0].mxu0
      %v291 = vpop.f32.mrb[0].mxu0
      %v292 = vadd.f32 %v236, %v291
      %v293 = vpop.f32.mrb[0].mxu0
      %294 = vdwg.mxu0
      %v295 = vld [vmem:[%s215] sm:$0xff]
      %v296 = vld [vmem:[%s215 + $0x8] sm:$0xff]
      %v297 = vadd.f32 %v289, %v295
      %v298 = vadd.f32 %v292, %v296
      %v299 = vmax.f32 %v297, 0.0
      %v300 = vmax.f32 %v298, 0.0
      %301 = vst.msk [vmem:[%s221] sm:$0xff] %vm250, %v299
      %302 = vst.msk [vmem:[%s221 + $0x8] sm:$0xff] %vm250, %v300
      %s303 = smul.u32 2, %s15
      %p304 = scmp.lt.s32.totalorder %s303, 3
      %s305 = scalar_select %p304, %s303, 3
      %s306 = smul.addr %s305, 8
      %s307 = scalar_lea.vmem %s4, %s306
      // Predicated region
      $region37: #{_lambda_.11} parent=35 // pred_check
        %p308 = pneg %p127
      $region38: #{_lambda_.11} parent=35 // pred_check_branch
        %310 = sbr.rel (%p308) target = $region40
      $region39: #{_lambda_.11} parent=35 // pred_region
        %s311 = smul.u32 2, %s15
      $region40: #{_lambda_.11} parent=35 // pred_fallthru
        _
    $region36: #{_lambda_.11} parent=5 // pred_fallthru
      _
    %p312 = scmp.le.s32.totalorder 2, %s10
    // Predicated region
    $region41: #{_lambda_.11} parent=5 // pred_check
      %p313 = pneg %p312
    $region42: #{_lambda_.11} parent=5 // pred_check_branch
      %315 = sbr.rel (%p313) target = $region44
    $region43: #{_lambda_.11} parent=5 // pred_region
      %s316 = ssub.s32 %s10, 2
      // Predicated region
      $region45: #{_lambda_.11} parent=43 // pred_check
        %p317 = pneg %p133
      $region46: #{_lambda_.11} parent=43 // pred_check_branch
        %319 = sbr.rel (%p317) target = $region48
      $region47: #{_lambda_.11} parent=43 // pred_region
        %s320 = smul.u32 2, %s16
        %p321 = scmp.lt.s32.totalorder %s320, 3
        %s322 = scalar_select %p321, %s320, 3
        %s323 = smul.addr %s322, 8
        %s324 = scalar_lea.vmem %s4, %s323
      $region48: #{_lambda_.11} parent=43 // pred_fallthru
        _
    $region44: #{_lambda_.11} parent=5 // pred_fallthru
      _
  $region6: #{_lambda_.11} parent=0 // loop_footer
    %s14 = sadd.s32 1, %s10
  $region7: #{_lambda_.11} parent=0 // loop_footer_branch
    %9 = sbr.rel target = $region3
  $region8: #{_lambda_.11} parent=0 // loop_exit
    _

// kernel: _lambda_.15
$region0: #{_lambda_.15}
  #allocation0 [shape = 'u32[]', space=smem, size = 0x4, offset = 0x4, fixed_abs, tag = 'smem constant byte address 0x4 - core index']
  #allocation1 [shape = 'u32[144,128]{1,0:T(1,128)}', space=vmem, size = 0x12000, scoped, tag = 'internal scratch']
  %s0 = inlined_call_operand.vmem [shape: f32[32,32], index: 0, kind: input, shape index: {}]
  %s1 = inlined_call_operand.vmem [shape: bf16[32,32], index: 1, kind: input, shape index: {}]
  %s2 = inlined_call_operand.vmem [shape: f32[1,32], index: 2, kind: input, shape index: {}]
  %s3 = inlined_call_operand.vmem [shape: f32[32,32], index: 3, kind: input, shape index: {}]
  %s4 = inlined_call_operand.vmem [shape: f32[32,32], index: 4, kind: output, shape index: {}]
  %s5 = sld [smem:[#allocation0]]
  $region49: #{_lambda_.15} parent=0
    _
  %s7 = ssub.s32 1, %s5
  %s8 = scalar_select 0, %s7, %s5
  loop: start=0, step=1, limit=4
  $region2: #{_lambda_.15} parent=0 // loop_pre_header
    _
  $region3: #{_lambda_.15} parent=0 // loop_header
    %s10 = sphi 0, %s14
    %p11 = scmp.ge.s32.totalorder %s10, 4
    %s20 = sphi 0, %s22
    %s23 = sphi 0, %s20
    %s24 = sphi 0, %s23
    %s40 = sphi 0, %s24
    %s44 = sphi 0, %s44
    %s46 = sphi 0, %s44
    %s47 = sphi 0, %s46
    %s61 = sphi 0, %s47
    %s65 = sphi 0, %s65
    %s67 = sphi 0, %s65
    %s68 = sphi 0, %s67
    %s82 = sphi 0, %s68
    %s88 = sphi 0, %s90
    %s91 = sphi 0, %s88
    %s92 = sphi 0, %s91
    %s108 = sphi 0, %s92
    %s114 = sphi 0, %s116
    %s117 = sphi 0, %s114
    %s118 = sphi 0, %s117
    %s134 = sphi 0, %s118
  $region4: #{_lambda_.15} parent=0 // loop_header_branch
    %13 = sbr.rel (%p11) target = $region8
  $region5: #{_lambda_.15} parent=0 // loop_body
    %s15 = ssub.s32 %s10, 1
    %s16 = ssub.s32 %s10, 2
    %s17 = sadd.s32 %s10, 1
    %s18 = ssub.s32 %s10, %s17
    %p19 = scmp.eq.s32.totalorder %s18, 0
    %s21 = sadd.s32 %s20, 1
    %s22 = scalar_select %p19, %s20, %s21
    %p25 = pneg %p19
    %p26 = scmp.eq.s32.totalorder %s10, 1
    %p27 = por %p25, %p26
    %p28 = scmp.ne.s32.totalorder %s20, %s23
    %p29 = scmp.eq.s32.totalorder %s10, 0
    %p30 = por %p28, %p29
    %p31 = scmp.ne.s32.totalorder %s20, %s23
    %p32 = scmp.eq.s32.totalorder %s15, 1
    %p33 = por %p31, %p32
    %p34 = scmp.ne.s32.totalorder %s23, %s24
    %p35 = scmp.eq.s32.totalorder %s15, 0
    %p36 = por %p34, %p35
    %p37 = scmp.ne.s32.totalorder %s23, %s24
    %p38 = scmp.eq.s32.totalorder %s16, 1
    %p39 = por %p37, %p38
    %p41 = scmp.ne.s32.totalorder %s24, %s40
    %p42 = scmp.eq.s32.totalorder %s16, 0
    %p43 = por %p41, %p42
    %s45 = sadd.s32 %s44, 1
    %p48 = scmp.eq.s32.totalorder %s10, 1
    %p49 = scmp.ne.s32.totalorder %s44, %s46
    %p50 = scmp.eq.s32.totalorder %s10, 0
    %p51 = por %p49, %p50
    %p52 = scmp.ne.s32.totalorder %s44, %s46
    %p53 = scmp.eq.s32.totalorder %s15, 1
    %p54 = por %p52, %p53
    %p55 = scmp.ne.s32.totalorder %s46, %s47
    %p56 = scmp.eq.s32.totalorder %s15, 0
    %p57 = por %p55, %p56
    %p58 = scmp.ne.s32.totalorder %s46, %s47
    %p59 = scmp.eq.s32.totalorder %s16, 1
    %p60 = por %p58, %p59
    %p62 = scmp.ne.s32.totalorder %s47, %s61
    %p63 = scmp.eq.s32.totalorder %s16, 0
    %p64 = por %p62, %p63
    %s66 = sadd.s32 %s65, 1
    %p69 = scmp.eq.s32.totalorder %s10, 1
    %p70 = scmp.ne.s32.totalorder %s65, %s67
    %p71 = scmp.eq.s32.totalorder %s10, 0
    %p72 = por %p70, %p71
    %p73 = scmp.ne.s32.totalorder %s65, %s67
    %p74 = scmp.eq.s32.totalorder %s15, 1
    %p75 = por %p73, %p74
    %p76 = scmp.ne.s32.totalorder %s67, %s68
    %p77 = scmp.eq.s32.totalorder %s15, 0
    %p78 = por %p76, %p77
    %p79 = scmp.ne.s32.totalorder %s67, %s68
    %p80 = scmp.eq.s32.totalorder %s16, 1
    %p81 = por %p79, %p80
    %p83 = scmp.ne.s32.totalorder %s68, %s82
    %p84 = scmp.eq.s32.totalorder %s16, 0
    %p85 = por %p83, %p84
    %s86 = ssub.s32 %s10, %s17
    %p87 = scmp.eq.s32.totalorder %s86, 0
    %s89 = sadd.s32 %s88, 1
    %s90 = scalar_select %p87, %s88, %s89
    %p93 = pneg %p87
    %p94 = scmp.eq.s32.totalorder %s10, 1
    %p95 = por %p93, %p94
    %p96 = scmp.ne.s32.totalorder %s88, %s91
    %p97 = scmp.eq.s32.totalorder %s10, 0
    %p98 = por %p96, %p97
    %p99 = scmp.ne.s32.totalorder %s88, %s91
    %p100 = scmp.eq.s32.totalorder %s15, 1
    %p101 = por %p99, %p100
    %p102 = scmp.ne.s32.totalorder %s91, %s92
    %p103 = scmp.eq.s32.totalorder %s15, 0
    %p104 = por %p102, %p103
    %p105 = scmp.ne.s32.totalorder %s91, %s92
    %p106 = scmp.eq.s32.totalorder %s16, 1
    %p107 = por %p105, %p106
    %p109 = scmp.ne.s32.totalorder %s92, %s108
    %p110 = scmp.eq.s32.totalorder %s16, 0
    %p111 = por %p109, %p110
    %s112 = ssub.s32 %s10, %s17
    %p113 = scmp.eq.s32.totalorder %s112, 0
    %s115 = sadd.s32 %s114, 1
    %s116 = scalar_select %p113, %s114, %s115
    %p119 = pneg %p113
    %p120 = scmp.eq.s32.totalorder %s10, 1
    %p121 = por %p119, %p120
    %p122 = scmp.ne.s32.totalorder %s114, %s117
    %p123 = scmp.eq.s32.totalorder %s10, 0
    %p124 = por %p122, %p123
    %p125 = scmp.ne.s32.totalorder %s114, %s117
    %p126 = scmp.eq.s32.totalorder %s15, 1
    %p127 = por %p125, %p126
    %p128 = scmp.ne.s32.totalorder %s117, %s118
    %p129 = scmp.eq.s32.totalorder %s15, 0
    %p130 = por %p128, %p129
    %p131 = scmp.ne.s32.totalorder %s117, %s118
    %p132 = scmp.eq.s32.totalorder %s16, 1
    %p133 = por %p131, %p132
    %p135 = scmp.ne.s32.totalorder %s118, %s134
    %p136 = scmp.eq.s32.totalorder %s16, 0
    %p137 = por %p135, %p136
    %p138 = scmp.le.s32.totalorder 1, %s10
    %p139 = scmp.lt.s32.totalorder %s10, 3
    %p140 = pnand %p138, %p139
    %p141 = pneg %p140
    // Predicated region
    $region9: #{_lambda_.15} parent=5 // pred_check
      _
    $region10: #{_lambda_.15} parent=5 // pred_check_branch
      %143 = sbr.rel (%p140) target = $region12
    $region11: #{_lambda_.15} parent=5 // pred_region
      %s144 = ssub.s32 %s10, 1
      // Predicated region
      $region13: #{_lambda_.15} parent=11 // pred_check
        %p145 = pneg %p57
      $region14: #{_lambda_.15} parent=11 // pred_check_branch
        %147 = sbr.rel (%p145) target = $region16
      $region15: #{_lambda_.15} parent=11 // pred_region
        _
      $region16: #{_lambda_.15} parent=11 // pred_fallthru
        _
      // Predicated region
      $region17: #{_lambda_.15} parent=11 // pred_check
        %p148 = pneg %p78
      $region18: #{_lambda_.15} parent=11 // pred_check_branch
        %150 = sbr.rel (%p148) target = $region20
      $region19: #{_lambda_.15} parent=11 // pred_region
        _
      $region20: #{_lambda_.15} parent=11 // pred_fallthru
        _
    $region12: #{_lambda_.15} parent=5 // pred_fallthru
      _
    %p151 = scmp.lt.s32.totalorder %s10, 2
    // Predicated region
    $region21: #{_lambda_.15} parent=5 // pred_check
      %p152 = pneg %p151
    $region22: #{_lambda_.15} parent=5 // pred_check_branch
      %154 = sbr.rel (%p152) target = $region24
    $region23: #{_lambda_.15} parent=5 // pred_region
      // Predicated region
      $region25: #{_lambda_.15} parent=23 // pred_check
        %p155 = pneg %p30
      $region26: #{_lambda_.15} parent=23 // pred_check_branch
        %157 = sbr.rel (%p155) target = $region28
      $region27: #{_lambda_.15} parent=23 // pred_region
        %s158 = smul.u32 2, %s10
        %p159 = scmp.lt.s32.totalorder %s158, 3
        %s160 = scalar_select %p159, %s158, 3
        %s161 = smul.addr %s160, 8
        %s162 = scalar_lea.vmem %s0, %s161
        %s163 = smul.u32 2, %s10
      $region28: #{_lambda_.15} parent=23 // pred_fallthru
        _
      // Predicated region
      $region29: #{_lambda_.15} parent=23 // pred_check
        %p164 = pneg %p98
      $region30: #{_lambda_.15} parent=23 // pred_check_branch
        %166 = sbr.rel (%p164) target = $region32
      $region31: #{_lambda_.15} parent=23 // pred_region
        %s167 = smul.u32 2, %s10
        %p168 = scmp.lt.s32.totalorder %s167, 3
        %s169 = scalar_select %p168, %s167, 3
        %s170 = smul.addr %s169, 8
        %s171 = scalar_lea.vmem %s3, %s170
        %s172 = smul.u32 2, %s10
      $region32: #{_lambda_.15} parent=23 // pred_fallthru
        _
    $region24: #{_lambda_.15} parent=5 // pred_fallthru
      _
    %p173 = scmp.le.s32.totalorder 1, %s10
    %p174 = scmp.lt.s32.totalorder %s10, 3
    %p175 = pnand %p173, %p174
    %p176 = pneg %p175
    // Predicated region
    $region33: #{_lambda_.15} parent=5 // pred_check
      _
    $region34: #{_lambda_.15} parent=5 // pred_check_branch
      %178 = sbr.rel (%p175) target = $region36
    $region35: #{_lambda_.15} parent=5 // pred_region
      %s179 = ssub.s32 %s10, 1
      %s180 = smul.u32 2, %s15
      %p181 = scmp.lt.s32.totalorder %s180, 3
      %s182 = scalar_select %p181, %s180, 3
      %s183 = smul.addr %s182, 8
      %s184 = scalar_lea.vmem %s0, %s183
      %p185 = pneg %p36
      %p186 = pneg %p33
      %p187 = pneg %p57
      %p188 = pneg %p54
      %p189 = pneg %p78
      %p190 = pneg %p75
      %s191 = smul.u32 2, %s15
      %p192 = scmp.lt.s32.totalorder %s191, 3
      %s193 = scalar_select %p192, %s191, 3
      %s194 = smul.addr %s193, 8
      %s195 = scalar_lea.vmem %s3, %s194
      %p196 = pneg %p104
      %p197 = pneg %p101
      %p198 = pneg %p130
      %p199 = pneg %p127
      %s200 = smul.u32 2, %s15
      %p201 = scmp.lt.s32.totalorder %s200, 3
      %s202 = scalar_select %p201, %s200, 3
      %s203 = smul.addr %s202, 8
      %s204 = scalar_lea.vmem %s4, %s203
      %s205 = smul.u32 2, %s15
      %p206 = scmp.lt.s32.totalorder %s205, 3
      %s207 = scalar_select %p206, %s205, 3
      %s208 = smul.addr %s207, 8
      %s209 = scalar_lea.vmem %s0, %s208
      %s210 = smul.u32 2, %s15
      %s211 = smul.u32 2, %s15
      %p212 = scmp.lt.s32.totalorder %s211, 3
      %s213 = scalar_select %p212, %s211, 3
      %s214 = smul.addr %s213, 8
      %s215 = scalar_lea.vmem %s3, %s214
      %s216 = smul.u32 2, %s15
      %s217 = smul.u32 2, %s15
      %p218 = scmp.lt.s32.totalorder %s217, 3
      %s219 = scalar_select %p218, %s217, 3
      %s220 = smul.addr %s219, 8
      %s221 = scalar_lea.vmem %s4, %s220
      %s222 = smul.u32 2, %s15
      %v224 = vld [vmem:[%s209] sm:$0xff]
      %v225 = vld [vmem:[%s209 + $0x8] sm:$0xff]
      %v226 = vpack.c.bf16 %v225, %v224
      %v227 = vld [vmem:[%s1] sm:$0xf]
      %v228 = vld [vmem:[%s1 + $0x4] sm:$0xf]
      %v229 = vld [vmem:[%s1 + $0x8] sm:$0xf]
      %v230 = vld [vmem:[%s1 + $0xc] sm:$0xf]
      %v231 = vld [vmem:[%s2] sm:$0x1]
      %v233 = vlaneseq
      %v234 = vshrl.u32 %v233, 7
      %v235 = vsub.s32 0, %v234
      %v236 = vrot.slane %v231, %v235
      %v242 = vunpack.c.l.b16 %v227
      %v243 = vunpack.c.l.b16 %v228
      %v244 = vunpack.c.l.b16 %v229
      %v245 = vunpack.c.l.b16 %v230
      %v246 = vpack.c.b16 %v243, %v242
      %v247 = vpack.c.b16 %v245, %v244
      %vm250 = vcmask 261120
      %v252 = vsel %vm250, %v226, 0
      %254 = vmatprep.subr.bf16.mxu0 0
      %255 = vmatpush1.bf16.msra.mxu0 %v246
      %256 = vmatprep.subr.bf16.mxu0 0
      %257 = vmatpush1.bf16.msra.mxu0 %v247
      %258 = vmatprep.subr.bf16.mxu0 0
      %259 = vmatpush1.bf16.msra.mxu0 0
      %260 = vmatprep.subr.bf16.mxu0 0
      %261 = vmatpush1.bf16.msra.mxu0 0
      %262 = vmatprep.subr.bf16.mxu0 0
      %263 = vmatpush1.bf16.msra.mxu0 0
      %264 = vmatprep.subr.bf16.mxu0 0
      %265 = vmatpush1.bf16.msra.mxu0 0
      %266 = vmatprep.subr.bf16.mxu0 0
      %267 = vmatpush1.bf16.msra.mxu0 0
      %268 = vmatprep.subr.bf16.mxu0 0
      %269 = vmatpush1.bf16.msra.mxu0 0
      %270 = vmatprep.subr.bf16.mxu0 0
      %271 = vmatpush1.bf16.msra.mxu0 0
      %272 = vmatprep.subr.bf16.mxu0 0
      %273 = vmatpush1.bf16.msra.mxu0 0
      %274 = vmatprep.subr.bf16.mxu0 0
      %275 = vmatpush1.bf16.msra.mxu0 0
      %276 = vmatprep.subr.bf16.mxu0 0
      %277 = vmatpush1.bf16.msra.mxu0 0
      %278 = vmatprep.subr.bf16.mxu0 0
      %279 = vmatpush1.bf16.msra.mxu0 0
      %280 = vmatprep.subr.bf16.mxu0 0
      %281 = vmatpush1.bf16.msra.mxu0 0
      %282 = vmatprep.subr.bf16.mxu0 0
      %283 = vmatpush1.bf16.msra.mxu0 0
      %284 = vmatprep.subr.bf16.mxu0 0
      %285 = vmatpush1.bf16.msra.mxu0 0
      %286 = vmatprep.mubr.bf16.mxu0 0
      %287 = vmatmul.mubr.bf16.gmra.mrb[0].mxu0 %v252
      %v288 = vpop.f32.mrb[0].mxu0
      %v289 = vadd.f32 %v236, %v288
      %v290 = vpop.f32.mrb[0].mxu0
      %v291 = vpop.f32.mrb[0].mxu0
      %v292 = vadd.f32 %v236, %v291
      %v293 = vpop.f32.mrb[0].mxu0
      %294 = vdwg.mxu0
      %v295 = vld [vmem:[%s215] sm:$0xff]
      %v296 = vld [vmem:[%s215 + $0x8] sm:$0xff]
      %v297 = vadd.f32 %v289, %v295
      %v298 = vadd.f32 %v292, %v296
      %299 = vst.msk [vmem:[%s221] sm:$0xff] %vm250, %v297
      %300 = vst.msk [vmem:[%s221 + $0x8] sm:$0xff] %vm250, %v298
      %s301 = smul.u32 2, %s15
      %p302 = scmp.lt.s32.totalorder %s301, 3
      %s303 = scalar_select %p302, %s301, 3
      %s304 = smul.addr %s303, 8
      %s305 = scalar_lea.vmem %s4, %s304
      // Predicated region
      $region37: #{_lambda_.15} parent=35 // pred_check
        %p306 = pneg %p127
      $region38: #{_lambda_.15} parent=35 // pred_check_branch
        %308 = sbr.rel (%p306) target = $region40
      $region39: #{_lambda_.15} parent=35 // pred_region
        %s309 = smul.u32 2, %s15
      $region40: #{_lambda_.15} parent=35 // pred_fallthru
        _
    $region36: #{_lambda_.15} parent=5 // pred_fallthru
      _
    %p310 = scmp.le.s32.totalorder 2, %s10
    // Predicated region
    $region41: #{_lambda_.15} parent=5 // pred_check
      %p311 = pneg %p310
    $region42: #{_lambda_.15} parent=5 // pred_check_branch
      %313 = sbr.rel (%p311) target = $region44
    $region43: #{_lambda_.15} parent=5 // pred_region
      %s314 = ssub.s32 %s10, 2
      // Predicated region
      $region45: #{_lambda_.15} parent=43 // pred_check
        %p315 = pneg %p133
      $region46: #{_lambda_.15} parent=43 // pred_check_branch
        %317 = sbr.rel (%p315) target = $region48
      $region47: #{_lambda_.15} parent=43 // pred_region
        %s318 = smul.u32 2, %s16
        %p319 = scmp.lt.s32.totalorder %s318, 3
        %s320 = scalar_select %p319, %s318, 3
        %s321 = smul.addr %s320, 8
        %s322 = scalar_lea.vmem %s4, %s321
      $region48: #{_lambda_.15} parent=43 // pred_fallthru
        _
    $region44: #{_lambda_.15} parent=5 // pred_fallthru
      _
  $region6: #{_lambda_.15} parent=0 // loop_footer
    %s14 = sadd.s32 1, %s10
  $region7: #{_lambda_.15} parent=0 // loop_footer_branch
    %9 = sbr.rel target = $region3
  $region8: #{_lambda_.15} parent=0 // loop_exit
    _

// kernel: _lambda_.16
$region0: #{_lambda_.16}
  #allocation0 [shape = 'u32[]', space=smem, size = 0x4, offset = 0x4, fixed_abs, tag = 'smem constant byte address 0x4 - core index']
  #allocation1 [shape = 'u32[144,128]{1,0:T(1,128)}', space=vmem, size = 0x12000, scoped, tag = 'internal scratch']
  %s0 = inlined_call_operand.vmem [shape: f32[32,32], index: 0, kind: input, shape index: {}]
  %s1 = inlined_call_operand.vmem [shape: bf16[32,64], index: 1, kind: input, shape index: {}]
  %s2 = inlined_call_operand.vmem [shape: f32[1,64], index: 2, kind: input, shape index: {}]
  %s3 = inlined_call_operand.vmem [shape: f32[32,64], index: 3, kind: output, shape index: {}]
  %s4 = sld [smem:[#allocation0]]
  $region45: #{_lambda_.16} parent=0
    _
  %s6 = ssub.s32 1, %s4
  %s7 = scalar_select 0, %s6, %s4
  loop: start=0, step=1, limit=4
  $region2: #{_lambda_.16} parent=0 // loop_pre_header
    _
  $region3: #{_lambda_.16} parent=0 // loop_header
    %s9 = sphi 0, %s13
    %p10 = scmp.ge.s32.totalorder %s9, 4
    %s19 = sphi 0, %s21
    %s22 = sphi 0, %s19
    %s23 = sphi 0, %s22
    %s39 = sphi 0, %s23
    %s43 = sphi 0, %s43
    %s45 = sphi 0, %s43
    %s46 = sphi 0, %s45
    %s60 = sphi 0, %s46
    %s64 = sphi 0, %s64
    %s66 = sphi 0, %s64
    %s67 = sphi 0, %s66
    %s81 = sphi 0, %s67
    %s87 = sphi 0, %s89
    %s90 = sphi 0, %s87
    %s91 = sphi 0, %s90
    %s107 = sphi 0, %s91
  $region4: #{_lambda_.16} parent=0 // loop_header_branch
    %12 = sbr.rel (%p10) target = $region8
  $region5: #{_lambda_.16} parent=0 // loop_body
    %s14 = ssub.s32 %s9, 1
    %s15 = ssub.s32 %s9, 2
    %s16 = sadd.s32 %s9, 1
    %s17 = ssub.s32 %s9, %s16
    %p18 = scmp.eq.s32.totalorder %s17, 0
    %s20 = sadd.s32 %s19, 1
    %s21 = scalar_select %p18, %s19, %s20
    %p24 = pneg %p18
    %p25 = scmp.eq.s32.totalorder %s9, 1
    %p26 = por %p24, %p25
    %p27 = scmp.ne.s32.totalorder %s19, %s22
    %p28 = scmp.eq.s32.totalorder %s9, 0
    %p29 = por %p27, %p28
    %p30 = scmp.ne.s32.totalorder %s19, %s22
    %p31 = scmp.eq.s32.totalorder %s14, 1
    %p32 = por %p30, %p31
    %p33 = scmp.ne.s32.totalorder %s22, %s23
    %p34 = scmp.eq.s32.totalorder %s14, 0
    %p35 = por %p33, %p34
    %p36 = scmp.ne.s32.totalorder %s22, %s23
    %p37 = scmp.eq.s32.totalorder %s15, 1
    %p38 = por %p36, %p37
    %p40 = scmp.ne.s32.totalorder %s23, %s39
    %p41 = scmp.eq.s32.totalorder %s15, 0
    %p42 = por %p40, %p41
    %s44 = sadd.s32 %s43, 1
    %p47 = scmp.eq.s32.totalorder %s9, 1
    %p48 = scmp.ne.s32.totalorder %s43, %s45
    %p49 = scmp.eq.s32.totalorder %s9, 0
    %p50 = por %p48, %p49
    %p51 = scmp.ne.s32.totalorder %s43, %s45
    %p52 = scmp.eq.s32.totalorder %s14, 1
    %p53 = por %p51, %p52
    %p54 = scmp.ne.s32.totalorder %s45, %s46
    %p55 = scmp.eq.s32.totalorder %s14, 0
    %p56 = por %p54, %p55
    %p57 = scmp.ne.s32.totalorder %s45, %s46
    %p58 = scmp.eq.s32.totalorder %s15, 1
    %p59 = por %p57, %p58
    %p61 = scmp.ne.s32.totalorder %s46, %s60
    %p62 = scmp.eq.s32.totalorder %s15, 0
    %p63 = por %p61, %p62
    %s65 = sadd.s32 %s64, 1
    %p68 = scmp.eq.s32.totalorder %s9, 1
    %p69 = scmp.ne.s32.totalorder %s64, %s66
    %p70 = scmp.eq.s32.totalorder %s9, 0
    %p71 = por %p69, %p70
    %p72 = scmp.ne.s32.totalorder %s64, %s66
    %p73 = scmp.eq.s32.totalorder %s14, 1
    %p74 = por %p72, %p73
    %p75 = scmp.ne.s32.totalorder %s66, %s67
    %p76 = scmp.eq.s32.totalorder %s14, 0
    %p77 = por %p75, %p76
    %p78 = scmp.ne.s32.totalorder %s66, %s67
    %p79 = scmp.eq.s32.totalorder %s15, 1
    %p80 = por %p78, %p79
    %p82 = scmp.ne.s32.totalorder %s67, %s81
    %p83 = scmp.eq.s32.totalorder %s15, 0
    %p84 = por %p82, %p83
    %s85 = ssub.s32 %s9, %s16
    %p86 = scmp.eq.s32.totalorder %s85, 0
    %s88 = sadd.s32 %s87, 1
    %s89 = scalar_select %p86, %s87, %s88
    %p92 = pneg %p86
    %p93 = scmp.eq.s32.totalorder %s9, 1
    %p94 = por %p92, %p93
    %p95 = scmp.ne.s32.totalorder %s87, %s90
    %p96 = scmp.eq.s32.totalorder %s9, 0
    %p97 = por %p95, %p96
    %p98 = scmp.ne.s32.totalorder %s87, %s90
    %p99 = scmp.eq.s32.totalorder %s14, 1
    %p100 = por %p98, %p99
    %p101 = scmp.ne.s32.totalorder %s90, %s91
    %p102 = scmp.eq.s32.totalorder %s14, 0
    %p103 = por %p101, %p102
    %p104 = scmp.ne.s32.totalorder %s90, %s91
    %p105 = scmp.eq.s32.totalorder %s15, 1
    %p106 = por %p104, %p105
    %p108 = scmp.ne.s32.totalorder %s91, %s107
    %p109 = scmp.eq.s32.totalorder %s15, 0
    %p110 = por %p108, %p109
    %p111 = scmp.le.s32.totalorder 1, %s9
    %p112 = scmp.lt.s32.totalorder %s9, 3
    %p113 = pnand %p111, %p112
    %p114 = pneg %p113
    // Predicated region
    $region9: #{_lambda_.16} parent=5 // pred_check
      _
    $region10: #{_lambda_.16} parent=5 // pred_check_branch
      %116 = sbr.rel (%p113) target = $region12
    $region11: #{_lambda_.16} parent=5 // pred_region
      %s117 = ssub.s32 %s9, 1
      // Predicated region
      $region13: #{_lambda_.16} parent=11 // pred_check
        %p118 = pneg %p56
      $region14: #{_lambda_.16} parent=11 // pred_check_branch
        %120 = sbr.rel (%p118) target = $region16
      $region15: #{_lambda_.16} parent=11 // pred_region
        _
      $region16: #{_lambda_.16} parent=11 // pred_fallthru
        _
      // Predicated region
      $region17: #{_lambda_.16} parent=11 // pred_check
        %p121 = pneg %p77
      $region18: #{_lambda_.16} parent=11 // pred_check_branch
        %123 = sbr.rel (%p121) target = $region20
      $region19: #{_lambda_.16} parent=11 // pred_region
        _
      $region20: #{_lambda_.16} parent=11 // pred_fallthru
        _
    $region12: #{_lambda_.16} parent=5 // pred_fallthru
      _
    %p124 = scmp.lt.s32.totalorder %s9, 2
    // Predicated region
    $region21: #{_lambda_.16} parent=5 // pred_check
      %p125 = pneg %p124
    $region22: #{_lambda_.16} parent=5 // pred_check_branch
      %127 = sbr.rel (%p125) target = $region24
    $region23: #{_lambda_.16} parent=5 // pred_region
      // Predicated region
      $region25: #{_lambda_.16} parent=23 // pred_check
        %p128 = pneg %p29
      $region26: #{_lambda_.16} parent=23 // pred_check_branch
        %130 = sbr.rel (%p128) target = $region28
      $region27: #{_lambda_.16} parent=23 // pred_region
        %s131 = smul.u32 2, %s9
        %p132 = scmp.lt.s32.totalorder %s131, 3
        %s133 = scalar_select %p132, %s131, 3
        %s134 = smul.addr %s133, 8
        %s135 = scalar_lea.vmem %s0, %s134
        %s136 = smul.u32 2, %s9
      $region28: #{_lambda_.16} parent=23 // pred_fallthru
        _
    $region24: #{_lambda_.16} parent=5 // pred_fallthru
      _
    %p137 = scmp.le.s32.totalorder 1, %s9
    %p138 = scmp.lt.s32.totalorder %s9, 3
    %p139 = pnand %p137, %p138
    %p140 = pneg %p139
    // Predicated region
    $region29: #{_lambda_.16} parent=5 // pred_check
      _
    $region30: #{_lambda_.16} parent=5 // pred_check_branch
      %142 = sbr.rel (%p139) target = $region32
    $region31: #{_lambda_.16} parent=5 // pred_region
      %s143 = ssub.s32 %s9, 1
      %s144 = smul.u32 2, %s14
      %p145 = scmp.lt.s32.totalorder %s144, 3
      %s146 = scalar_select %p145, %s144, 3
      %s147 = smul.addr %s146, 8
      %s148 = scalar_lea.vmem %s0, %s147
      %p149 = pneg %p35
      %p150 = pneg %p32
      %p151 = pneg %p56
      %p152 = pneg %p53
      %p153 = pneg %p77
      %p154 = pneg %p74
      %p155 = pneg %p103
      %p156 = pneg %p100
      %s157 = smul.u32 2, %s14
      %p158 = scmp.lt.s32.totalorder %s157, 3
      %s159 = scalar_select %p158, %s157, 3
      %s160 = smul.addr %s159, 8
      %s161 = scalar_lea.vmem %s3, %s160
      %s162 = smul.u32 2, %s14
      %p163 = scmp.lt.s32.totalorder %s162, 3
      %s164 = scalar_select %p163, %s162, 3
      %s165 = smul.addr %s164, 8
      %s166 = scalar_lea.vmem %s0, %s165
      %s167 = smul.u32 2, %s14
      %s168 = smul.u32 2, %s14
      %p169 = scmp.lt.s32.totalorder %s168, 3
      %s170 = scalar_select %p169, %s168, 3
      %s171 = smul.addr %s170, 8
      %s172 = scalar_lea.vmem %s3, %s171
      %s173 = smul.u32 2, %s14
      %v175 = vld [vmem:[%s166] sm:$0xff]
      %v176 = vld [vmem:[%s166 + $0x8] sm:$0xff]
      %v177 = vpack.c.bf16 %v176, %v175
      %v178 = vld [vmem:[%s1] sm:$0xf]
      %v179 = vld [vmem:[%s1 + $0x4] sm:$0xf]
      %v180 = vld [vmem:[%s1 + $0x8] sm:$0xf]
      %v181 = vld [vmem:[%s1 + $0xc] sm:$0xf]
      %v182 = vld [vmem:[%s2] sm:$0x1]
      %v184 = vlaneseq
      %v185 = vshrl.u32 %v184, 7
      %v186 = vsub.s32 0, %v185
      %v187 = vrot.slane %v182, %v186
      %v193 = vunpack.c.l.b16 %v178
      %v194 = vunpack.c.l.b16 %v179
      %v195 = vunpack.c.l.b16 %v180
      %v196 = vunpack.c.l.b16 %v181
      %v197 = vpack.c.b16 %v194, %v193
      %v198 = vpack.c.b16 %v196, %v195
      %vm201 = vcmask 261120
      %v203 = vsel %vm201, %v177, 0
      %205 = vmatprep.subr.bf16.mxu0 0
      %206 = vmatpush1.bf16.msra.mxu0 %v197
      %207 = vmatprep.subr.bf16.mxu0 0
      %208 = vmatpush1.bf16.msra.mxu0 %v198
      %209 = vmatprep.subr.bf16.mxu0 0
      %210 = vmatpush1.bf16.msra.mxu0 0
      %211 = vmatprep.subr.bf16.mxu0 0
      %212 = vmatpush1.bf16.msra.mxu0 0
      %213 = vmatprep.subr.bf16.mxu0 0
      %214 = vmatpush1.bf16.msra.mxu0 0
      %215 = vmatprep.subr.bf16.mxu0 0
      %216 = vmatpush1.bf16.msra.mxu0 0
      %217 = vmatprep.subr.bf16.mxu0 0
      %218 = vmatpush1.bf16.msra.mxu0 0
      %219 = vmatprep.subr.bf16.mxu0 0
      %220 = vmatpush1.bf16.msra.mxu0 0
      %221 = vmatprep.subr.bf16.mxu0 0
      %222 = vmatpush1.bf16.msra.mxu0 0
      %223 = vmatprep.subr.bf16.mxu0 0
      %224 = vmatpush1.bf16.msra.mxu0 0
      %225 = vmatprep.subr.bf16.mxu0 0
      %226 = vmatpush1.bf16.msra.mxu0 0
      %227 = vmatprep.subr.bf16.mxu0 0
      %228 = vmatpush1.bf16.msra.mxu0 0
      %229 = vmatprep.subr.bf16.mxu0 0
      %230 = vmatpush1.bf16.msra.mxu0 0
      %231 = vmatprep.subr.bf16.mxu0 0
      %232 = vmatpush1.bf16.msra.mxu0 0
      %233 = vmatprep.subr.bf16.mxu0 0
      %234 = vmatpush1.bf16.msra.mxu0 0
      %235 = vmatprep.subr.bf16.mxu0 0
      %236 = vmatpush1.bf16.msra.mxu0 0
      %237 = vmatprep.mubr.bf16.mxu0 0
      %238 = vmatmul.mubr.bf16.gmra.mrb[0].mxu0 %v203
      %v239 = vpop.f32.mrb[0].mxu0
      %v240 = vadd.f32 %v187, %v239
      %v241 = vpop.f32.mrb[0].mxu0
      %v242 = vpop.f32.mrb[0].mxu0
      %v243 = vadd.f32 %v187, %v242
      %v244 = vpop.f32.mrb[0].mxu0
      %245 = vdwg.mxu0
      %v246 = vmax.f32 %v240, 0.0
      %v247 = vmax.f32 %v243, 0.0
      %vm248 = vcmask 523264
      %249 = vst.msk [vmem:[%s172] sm:$0xff] %vm248, %v246
      %250 = vst.msk [vmem:[%s172 + $0x8] sm:$0xff] %vm248, %v247
      %s251 = smul.u32 2, %s14
      %p252 = scmp.lt.s32.totalorder %s251, 3
      %s253 = scalar_select %p252, %s251, 3
      %s254 = smul.addr %s253, 8
      %s255 = scalar_lea.vmem %s3, %s254
      // Predicated region
      $region33: #{_lambda_.16} parent=31 // pred_check
        %p256 = pneg %p100
      $region34: #{_lambda_.16} parent=31 // pred_check_branch
        %258 = sbr.rel (%p256) target = $region36
      $region35: #{_lambda_.16} parent=31 // pred_region
        %s259 = smul.u32 2, %s14
      $region36: #{_lambda_.16} parent=31 // pred_fallthru
        _
    $region32: #{_lambda_.16} parent=5 // pred_fallthru
      _
    %p260 = scmp.le.s32.totalorder 2, %s9
    // Predicated region
    $region37: #{_lambda_.16} parent=5 // pred_check
      %p261 = pneg %p260
    $region38: #{_lambda_.16} parent=5 // pred_check_branch
      %263 = sbr.rel (%p261) target = $region40
    $region39: #{_lambda_.16} parent=5 // pred_region
      %s264 = ssub.s32 %s9, 2
      // Predicated region
      $region41: #{_lambda_.16} parent=39 // pred_check
        %p265 = pneg %p106
      $region42: #{_lambda_.16} parent=39 // pred_check_branch
        %267 = sbr.rel (%p265) target = $region44
      $region43: #{_lambda_.16} parent=39 // pred_region
        %s268 = smul.u32 2, %s15
        %p269 = scmp.lt.s32.totalorder %s268, 3
        %s270 = scalar_select %p269, %s268, 3
        %s271 = smul.addr %s270, 8
        %s272 = scalar_lea.vmem %s3, %s271
      $region44: #{_lambda_.16} parent=39 // pred_fallthru
        _
    $region40: #{_lambda_.16} parent=5 // pred_fallthru
      _
  $region6: #{_lambda_.16} parent=0 // loop_footer
    %s13 = sadd.s32 1, %s9
  $region7: #{_lambda_.16} parent=0 // loop_footer_branch
    %8 = sbr.rel target = $region3
  $region8: #{_lambda_.16} parent=0 // loop_exit
    _

// kernel: _lambda_.17
$region0: #{_lambda_.17}
  #allocation0 [shape = 'u32[]', space=smem, size = 0x4, offset = 0x4, fixed_abs, tag = 'smem constant byte address 0x4 - core index']
  #allocation1 [shape = 'u32[144,128]{1,0:T(1,128)}', space=vmem, size = 0x12000, scoped, tag = 'internal scratch']
  #allocation2 [shape = 'f32[1,1]{1,0:T(1,128)S(1)}', space=vmem, size = 0x200, scoped, tag = 'scoped memory for _lambda_.17']
  %s0 = inlined_call_operand.vmem [shape: f32[32,64], index: 0, kind: input, shape index: {}]
  %s1 = inlined_call_operand.vmem [shape: bf16[64,1], index: 1, kind: input, shape index: {}]
  %s2 = inlined_call_operand.<no memory space> [shape: f32[1,1], index: 2, kind: input, shape index: {}]
  %s3 = inlined_call_operand.vmem [shape: f32[32,1], index: 3, kind: output, shape index: {}]
  %s4 = sld [smem:[#allocation0]]
  $region45: #{_lambda_.17} parent=0
    _
  %s6 = ssub.s32 1, %s4
  %s7 = scalar_select 0, %s6, %s4
  %v8 = vstv %s2
  %9 = vst [vmem:[#allocation2] sm:$0x1] %v8
  loop: start=0, step=1, limit=4
  $region2: #{_lambda_.17} parent=0 // loop_pre_header
    _
  $region3: #{_lambda_.17} parent=0 // loop_header
    %s11 = sphi 0, %s15
    %p12 = scmp.ge.s32.totalorder %s11, 4
    %s21 = sphi 0, %s23
    %s24 = sphi 0, %s21
    %s25 = sphi 0, %s24
    %s41 = sphi 0, %s25
    %s45 = sphi 0, %s45
    %s47 = sphi 0, %s45
    %s48 = sphi 0, %s47
    %s62 = sphi 0, %s48
    %s66 = sphi 0, %s66
    %s68 = sphi 0, %s66
    %s69 = sphi 0, %s68
    %s83 = sphi 0, %s69
    %s89 = sphi 0, %s91
    %s92 = sphi 0, %s89
    %s93 = sphi 0, %s92
    %s109 = sphi 0, %s93
  $region4: #{_lambda_.17} parent=0 // loop_header_branch
    %14 = sbr.rel (%p12) target = $region8
  $region5: #{_lambda_.17} parent=0 // loop_body
    %s16 = ssub.s32 %s11, 1
    %s17 = ssub.s32 %s11, 2
    %s18 = sadd.s32 %s11, 1
    %s19 = ssub.s32 %s11, %s18
    %p20 = scmp.eq.s32.totalorder %s19, 0
    %s22 = sadd.s32 %s21, 1
    %s23 = scalar_select %p20, %s21, %s22
    %p26 = pneg %p20
    %p27 = scmp.eq.s32.totalorder %s11, 1
    %p28 = por %p26, %p27
    %p29 = scmp.ne.s32.totalorder %s21, %s24
    %p30 = scmp.eq.s32.totalorder %s11, 0
    %p31 = por %p29, %p30
    %p32 = scmp.ne.s32.totalorder %s21, %s24
    %p33 = scmp.eq.s32.totalorder %s16, 1
    %p34 = por %p32, %p33
    %p35 = scmp.ne.s32.totalorder %s24, %s25
    %p36 = scmp.eq.s32.totalorder %s16, 0
    %p37 = por %p35, %p36
    %p38 = scmp.ne.s32.totalorder %s24, %s25
    %p39 = scmp.eq.s32.totalorder %s17, 1
    %p40 = por %p38, %p39
    %p42 = scmp.ne.s32.totalorder %s25, %s41
    %p43 = scmp.eq.s32.totalorder %s17, 0
    %p44 = por %p42, %p43
    %s46 = sadd.s32 %s45, 1
    %p49 = scmp.eq.s32.totalorder %s11, 1
    %p50 = scmp.ne.s32.totalorder %s45, %s47
    %p51 = scmp.eq.s32.totalorder %s11, 0
    %p52 = por %p50, %p51
    %p53 = scmp.ne.s32.totalorder %s45, %s47
    %p54 = scmp.eq.s32.totalorder %s16, 1
    %p55 = por %p53, %p54
    %p56 = scmp.ne.s32.totalorder %s47, %s48
    %p57 = scmp.eq.s32.totalorder %s16, 0
    %p58 = por %p56, %p57
    %p59 = scmp.ne.s32.totalorder %s47, %s48
    %p60 = scmp.eq.s32.totalorder %s17, 1
    %p61 = por %p59, %p60
    %p63 = scmp.ne.s32.totalorder %s48, %s62
    %p64 = scmp.eq.s32.totalorder %s17, 0
    %p65 = por %p63, %p64
    %s67 = sadd.s32 %s66, 1
    %p70 = scmp.eq.s32.totalorder %s11, 1
    %p71 = scmp.ne.s32.totalorder %s66, %s68
    %p72 = scmp.eq.s32.totalorder %s11, 0
    %p73 = por %p71, %p72
    %p74 = scmp.ne.s32.totalorder %s66, %s68
    %p75 = scmp.eq.s32.totalorder %s16, 1
    %p76 = por %p74, %p75
    %p77 = scmp.ne.s32.totalorder %s68, %s69
    %p78 = scmp.eq.s32.totalorder %s16, 0
    %p79 = por %p77, %p78
    %p80 = scmp.ne.s32.totalorder %s68, %s69
    %p81 = scmp.eq.s32.totalorder %s17, 1
    %p82 = por %p80, %p81
    %p84 = scmp.ne.s32.totalorder %s69, %s83
    %p85 = scmp.eq.s32.totalorder %s17, 0
    %p86 = por %p84, %p85
    %s87 = ssub.s32 %s11, %s18
    %p88 = scmp.eq.s32.totalorder %s87, 0
    %s90 = sadd.s32 %s89, 1
    %s91 = scalar_select %p88, %s89, %s90
    %p94 = pneg %p88
    %p95 = scmp.eq.s32.totalorder %s11, 1
    %p96 = por %p94, %p95
    %p97 = scmp.ne.s32.totalorder %s89, %s92
    %p98 = scmp.eq.s32.totalorder %s11, 0
    %p99 = por %p97, %p98
    %p100 = scmp.ne.s32.totalorder %s89, %s92
    %p101 = scmp.eq.s32.totalorder %s16, 1
    %p102 = por %p100, %p101
    %p103 = scmp.ne.s32.totalorder %s92, %s93
    %p104 = scmp.eq.s32.totalorder %s16, 0
    %p105 = por %p103, %p104
    %p106 = scmp.ne.s32.totalorder %s92, %s93
    %p107 = scmp.eq.s32.totalorder %s17, 1
    %p108 = por %p106, %p107
    %p110 = scmp.ne.s32.totalorder %s93, %s109
    %p111 = scmp.eq.s32.totalorder %s17, 0
    %p112 = por %p110, %p111
    %p113 = scmp.le.s32.totalorder 1, %s11
    %p114 = scmp.lt.s32.totalorder %s11, 3
    %p115 = pnand %p113, %p114
    %p116 = pneg %p115
    // Predicated region
    $region9: #{_lambda_.17} parent=5 // pred_check
      _
    $region10: #{_lambda_.17} parent=5 // pred_check_branch
      %118 = sbr.rel (%p115) target = $region12
    $region11: #{_lambda_.17} parent=5 // pred_region
      %s119 = ssub.s32 %s11, 1
      // Predicated region
      $region13: #{_lambda_.17} parent=11 // pred_check
        %p120 = pneg %p58
      $region14: #{_lambda_.17} parent=11 // pred_check_branch
        %122 = sbr.rel (%p120) target = $region16
      $region15: #{_lambda_.17} parent=11 // pred_region
        _
      $region16: #{_lambda_.17} parent=11 // pred_fallthru
        _
      // Predicated region
      $region17: #{_lambda_.17} parent=11 // pred_check
        %p123 = pneg %p79
      $region18: #{_lambda_.17} parent=11 // pred_check_branch
        %125 = sbr.rel (%p123) target = $region20
      $region19: #{_lambda_.17} parent=11 // pred_region
        _
      $region20: #{_lambda_.17} parent=11 // pred_fallthru
        _
    $region12: #{_lambda_.17} parent=5 // pred_fallthru
      _
    %p126 = scmp.lt.s32.totalorder %s11, 2
    // Predicated region
    $region21: #{_lambda_.17} parent=5 // pred_check
      %p127 = pneg %p126
    $region22: #{_lambda_.17} parent=5 // pred_check_branch
      %129 = sbr.rel (%p127) target = $region24
    $region23: #{_lambda_.17} parent=5 // pred_region
      // Predicated region
      $region25: #{_lambda_.17} parent=23 // pred_check
        %p130 = pneg %p31
      $region26: #{_lambda_.17} parent=23 // pred_check_branch
        %132 = sbr.rel (%p130) target = $region28
      $region27: #{_lambda_.17} parent=23 // pred_region
        %s133 = smul.u32 2, %s11
        %p134 = scmp.lt.s32.totalorder %s133, 3
        %s135 = scalar_select %p134, %s133, 3
        %s136 = smul.addr %s135, 8
        %s137 = scalar_lea.vmem %s0, %s136
        %s138 = smul.u32 2, %s11
      $region28: #{_lambda_.17} parent=23 // pred_fallthru
        _
    $region24: #{_lambda_.17} parent=5 // pred_fallthru
      _
    %p139 = scmp.le.s32.totalorder 1, %s11
    %p140 = scmp.lt.s32.totalorder %s11, 3
    %p141 = pnand %p139, %p140
    %p142 = pneg %p141
    // Predicated region
    $region29: #{_lambda_.17} parent=5 // pred_check
      _
    $region30: #{_lambda_.17} parent=5 // pred_check_branch
      %144 = sbr.rel (%p141) target = $region32
    $region31: #{_lambda_.17} parent=5 // pred_region
      %s145 = ssub.s32 %s11, 1
      %s146 = smul.u32 2, %s16
      %p147 = scmp.lt.s32.totalorder %s146, 3
      %s148 = scalar_select %p147, %s146, 3
      %s149 = smul.addr %s148, 8
      %s150 = scalar_lea.vmem %s0, %s149
      %p151 = pneg %p37
      %p152 = pneg %p34
      %p153 = pneg %p58
      %p154 = pneg %p55
      %p155 = pneg %p79
      %p156 = pneg %p76
      %p157 = pneg %p105
      %p158 = pneg %p102
      %s159 = smul.u32 2, %s16
      %p160 = scmp.lt.s32.totalorder %s159, 3
      %s161 = scalar_select %p160, %s159, 3
      %s162 = smul.addr %s161, 8
      %s163 = scalar_lea.vmem %s3, %s162
      %s164 = smul.u32 2, %s16
      %p165 = scmp.lt.s32.totalorder %s164, 3
      %s166 = scalar_select %p165, %s164, 3
      %s167 = smul.addr %s166, 8
      %s168 = scalar_lea.vmem %s0, %s167
      %s169 = smul.u32 2, %s16
      %s170 = smul.u32 2, %s16
      %p171 = scmp.lt.s32.totalorder %s170, 3
      %s172 = scalar_select %p171, %s170, 3
      %s173 = smul.addr %s172, 8
      %s174 = scalar_lea.vmem %s3, %s173
      %s175 = smul.u32 2, %s16
      %v177 = vld [vmem:[%s168] sm:$0xff]
      %v178 = vld [vmem:[%s168 + $0x8] sm:$0xff]
      %v179 = vpack.c.bf16 %v178, %v177
      %v180 = vld [vmem:[%s1] sm:$0xf]
      %v181 = vld [vmem:[%s1 + $0x4] sm:$0xf]
      %v182 = vld [vmem:[%s1 + $0x8] sm:$0xf]
      %v183 = vld [vmem:[%s1 + $0xc] sm:$0xf]
      %v184 = vld [vmem:[%s1 + $0x10] sm:$0xf]
      %v185 = vld [vmem:[%s1 + $0x14] sm:$0xf]
      %v186 = vld [vmem:[%s1 + $0x18] sm:$0xf]
      %v187 = vld [vmem:[%s1 + $0x1c] sm:$0xf]
      %v188 = vld [vmem:[#allocation2] sm:$0x1]
      %v190 = vlaneseq
      %v191 = vshrl.u32 %v190, 7
      %v192 = vsub.s32 0, %v191
      %v193 = vrot.slane %v188, %v192
      %v203 = vunpack.c.l.b16 %v180
      %v204 = vunpack.c.l.b16 %v181
      %v205 = vunpack.c.l.b16 %v182
      %v206 = vunpack.c.l.b16 %v183
      %v207 = vunpack.c.l.b16 %v184
      %v208 = vunpack.c.l.b16 %v185
      %v209 = vunpack.c.l.b16 %v186
      %v210 = vunpack.c.l.b16 %v187
      %v211 = vpack.c.b16 %v204, %v203
      %v212 = vpack.c.b16 %v206, %v205
      %v213 = vpack.c.b16 %v208, %v207
      %v214 = vpack.c.b16 %v210, %v209
      %vm219 = vcmask 523264
      %v221 = vsel %vm219, %v179, 0
      %223 = vmatprep.subr.bf16.mxu0 0
      %224 = vmatpush1.bf16.msra.mxu0 %v211
      %225 = vmatprep.subr.bf16.mxu0 0
      %226 = vmatpush1.bf16.msra.mxu0 %v212
      %227 = vmatprep.subr.bf16.mxu0 0
      %228 = vmatpush1.bf16.msra.mxu0 %v213
      %229 = vmatprep.subr.bf16.mxu0 0
      %230 = vmatpush1.bf16.msra.mxu0 %v214
      %231 = vmatprep.subr.bf16.mxu0 0
      %232 = vmatpush1.bf16.msra.mxu0 0
      %233 = vmatprep.subr.bf16.mxu0 0
      %234 = vmatpush1.bf16.msra.mxu0 0
      %235 = vmatprep.subr.bf16.mxu0 0
      %236 = vmatpush1.bf16.msra.mxu0 0
      %237 = vmatprep.subr.bf16.mxu0 0
      %238 = vmatpush1.bf16.msra.mxu0 0
      %239 = vmatprep.subr.bf16.mxu0 0
      %240 = vmatpush1.bf16.msra.mxu0 0
      %241 = vmatprep.subr.bf16.mxu0 0
      %242 = vmatpush1.bf16.msra.mxu0 0
      %243 = vmatprep.subr.bf16.mxu0 0
      %244 = vmatpush1.bf16.msra.mxu0 0
      %245 = vmatprep.subr.bf16.mxu0 0
      %246 = vmatpush1.bf16.msra.mxu0 0
      %247 = vmatprep.subr.bf16.mxu0 0
      %248 = vmatpush1.bf16.msra.mxu0 0
      %249 = vmatprep.subr.bf16.mxu0 0
      %250 = vmatpush1.bf16.msra.mxu0 0
      %251 = vmatprep.subr.bf16.mxu0 0
      %252 = vmatpush1.bf16.msra.mxu0 0
      %253 = vmatprep.subr.bf16.mxu0 0
      %254 = vmatpush1.bf16.msra.mxu0 0
      %255 = vmatprep.mubr.bf16.mxu0 0
      %256 = vmatmul.mubr.bf16.gmra.mrb[0].mxu0 %v221
      %v257 = vpop.f32.mrb[0].mxu0
      %v258 = vadd.f32 %v193, %v257
      %v259 = vpop.f32.mrb[0].mxu0
      %v260 = vpop.f32.mrb[0].mxu0
      %v261 = vadd.f32 %v193, %v260
      %v262 = vpop.f32.mrb[0].mxu0
      %263 = vdwg.mxu0
      %vm264 = vcmask 7168
      %265 = vst.msk [vmem:[%s174] sm:$0xff] %vm264, %v258
      %266 = vst.msk [vmem:[%s174 + $0x8] sm:$0xff] %vm264, %v261
      %s267 = smul.u32 2, %s16
      %p268 = scmp.lt.s32.totalorder %s267, 3
      %s269 = scalar_select %p268, %s267, 3
      %s270 = smul.addr %s269, 8
      %s271 = scalar_lea.vmem %s3, %s270
      // Predicated region
      $region33: #{_lambda_.17} parent=31 // pred_check
        %p272 = pneg %p102
      $region34: #{_lambda_.17} parent=31 // pred_check_branch
        %274 = sbr.rel (%p272) target = $region36
      $region35: #{_lambda_.17} parent=31 // pred_region
        %s275 = smul.u32 2, %s16
      $region36: #{_lambda_.17} parent=31 // pred_fallthru
        _
    $region32: #{_lambda_.17} parent=5 // pred_fallthru
      _
    %p276 = scmp.le.s32.totalorder 2, %s11
    // Predicated region
    $region37: #{_lambda_.17} parent=5 // pred_check
      %p277 = pneg %p276
    $region38: #{_lambda_.17} parent=5 // pred_check_branch
      %279 = sbr.rel (%p277) target = $region40
    $region39: #{_lambda_.17} parent=5 // pred_region
      %s280 = ssub.s32 %s11, 2
      // Predicated region
      $region41: #{_lambda_.17} parent=39 // pred_check
        %p281 = pneg %p108
      $region42: #{_lambda_.17} parent=39 // pred_check_branch
        %283 = sbr.rel (%p281) target = $region44
      $region43: #{_lambda_.17} parent=39 // pred_region
        %s284 = smul.u32 2, %s17
        %p285 = scmp.lt.s32.totalorder %s284, 3
        %s286 = scalar_select %p285, %s284, 3
        %s287 = smul.addr %s286, 8
        %s288 = scalar_lea.vmem %s3, %s287
      $region44: #{_lambda_.17} parent=39 // pred_fallthru
        _
    $region40: #{_lambda_.17} parent=5 // pred_fallthru
      _
  $region6: #{_lambda_.17} parent=0 // loop_footer
    %s15 = sadd.s32 1, %s11
  $region7: #{_lambda_.17} parent=0 // loop_footer_branch
    %10 = sbr.rel target = $region3
  $region8: #{_lambda_.17} parent=0 // loop_exit
    _

</llo_original>
